<compile_context>
chip_gen: v7x
topology: tpu7x:2x2x1
jax: 0.10.0
libtpu: 0.0.40
codegen_flags: <defaults>
</compile_context>

<pallas_src>
import jax
import jax.numpy as jnp
from jax.experimental import pallas as pl
from jax.experimental.pallas import tpu as pltpu

LANE = 128
SUBLANE = 8


def _round_up(n, m):
    return ((n + m - 1) // m) * m


def _maybe_pad(a, row_pad, col_pad):
    if row_pad == 0 and col_pad == 0:
        return a
    return jnp.pad(a, ((0, row_pad), (0, col_pad)))


def _vmem_capacity_bytes():
    try:
        info = pltpu.get_tpu_info()
        cap = getattr(info, "vmem_capacity_bytes", None)
        if cap:
            return int(cap)
    except Exception:
        pass
    return 64 << 20  # conservative: v7x per-TensorCore VMEM


# ----------------------------------------------------------------------------
# Kernel: all four layers fused; intermediates never round-trip HBM.
# ----------------------------------------------------------------------------
def mlp_kernel(x_ref, w1_ref, b1_ref, w2_ref, b2_ref, w3_ref, b3_ref,
               w4_ref, b4_ref,
               out_ref, h1_ref, h2_ref, h3_ref):
    mm_dtype = w1_ref.dtype   # f32 or bf16 MXU operands; accumulation is f32.

    h1 = jnp.maximum(
        jnp.dot(x_ref[...].astype(mm_dtype), w1_ref[...],
                preferred_element_type=jnp.float32) + b1_ref[...], 0.0)
    h1_ref[...] = h1.astype(h1_ref.dtype)           # cast folded into the store

    h2 = jnp.maximum(
        jnp.dot(h1.astype(mm_dtype), w2_ref[...],
                preferred_element_type=jnp.float32) + b2_ref[...], 0.0)
    h2_ref[...] = h2.astype(h2_ref.dtype)

    h3 = jnp.maximum(
        jnp.dot(h2.astype(mm_dtype), w3_ref[...],
                preferred_element_type=jnp.float32) + b3_ref[...], 0.0)
    h3_ref[...] = h3.astype(h3_ref.dtype)

    out = (jnp.dot(h3.astype(mm_dtype), w4_ref[...],
                   preferred_element_type=jnp.float32) + b4_ref[...])
    out_ref[...] = out.astype(out_ref.dtype)


# ----------------------------------------------------------------------------
# Parameter preparation (hoisted off the per-call path).
# ----------------------------------------------------------------------------
def prepare_params(params, *, matmul_dtype=jnp.float32):
    """Pad weights/biases to lane-dense (128-multiple) shapes and optionally
    cast weights to bf16, once.  Returns (padded_params, (in, h, out) dims).
    Zero padding is exact: padded input features hit zero weight rows, padded
    output columns (zero weights + zero bias) stay zero through ReLU."""
    in_dim, h_dim = params["w1"].shape
    out_dim = params["w4"].shape[1]
    in_p = _round_up(in_dim, LANE)
    h_p = _round_up(h_dim, LANE)
    out_p = _round_up(out_dim, LANE)
    padded = {
        "w1": _maybe_pad(params["w1"].astype(matmul_dtype), in_p - in_dim, h_p - h_dim),
        "w2": _maybe_pad(params["w2"].astype(matmul_dtype), h_p - h_dim, h_p - h_dim),
        "w3": _maybe_pad(params["w3"].astype(matmul_dtype), h_p - h_dim, h_p - h_dim),
        "w4": _maybe_pad(params["w4"].astype(matmul_dtype), h_p - h_dim, out_p - out_dim),
        "b1": _maybe_pad(params["b1"].astype(jnp.float32), 0, h_p - h_dim),
        "b2": _maybe_pad(params["b2"].astype(jnp.float32), 0, h_p - h_dim),
        "b3": _maybe_pad(params["b3"].astype(jnp.float32), 0, h_p - h_dim),
        "b4": _maybe_pad(params["b4"].astype(jnp.float32), 0, out_p - out_dim),
    }
    return padded, (in_dim, h_dim, out_dim)


# ----------------------------------------------------------------------------
# Forward wrapper.
# ----------------------------------------------------------------------------
def mlp_forward(x, params, *, logical_dims=None, block_batch=None,
                activation_dtype=jnp.float32, matmul_dtype=jnp.float32):
    """params: raw (fan_in, fan_out)/(1, fan_out) f32 params, or the output of
    prepare_params() together with logical_dims=(in_dim, h_dim, out_dim)."""
    if logical_dims is None:
        params, logical_dims = prepare_params(params, matmul_dtype=matmul_dtype)
    p = params
    in_dim, h_dim, out_dim = logical_dims
    mm_dtype = p["w1"].dtype
    in_p, h_p = p["w1"].shape
    out_p = p["w4"].shape[1]

    batch = x.shape[0]
    capacity = _vmem_capacity_bytes()
    if block_batch is None:
        block_batch = 256 if capacity <= (64 << 20) else 512

    # --- batch tiling: balanced tiles, <8 padded rows per step ------------
    nsteps = max(pl.cdiv(batch, block_batch), 1)
    if nsteps == 1 and batch >= 256:
        nsteps = 2            # let the "parallel" axis shard across v7x's 2 TCs
    tb = _round_up(pl.cdiv(batch, nsteps), SUBLANE)
    batch_p = nsteps * tb

    # --- VMEM accounting ----------------------------------------------------
    mm_itemsize = jnp.dtype(mm_dtype).itemsize
    act_itemsize = jnp.dtype(activation_dtype).itemsize
    weight_elems = in_p * h_p + 2 * h_p * h_p + h_p * out_p
    bias_elems = 3 * h_p + out_p
    resident_bytes = mm_itemsize * weight_elems + 4 * bias_elems      # single-buffered
    tile_bytes = 2 * (4 * tb * in_p + 4 * tb * out_p                  # x / out tiles
                      + 3 * act_itemsize * tb * h_p)                  # h1..h3 tiles
    budget = int(0.85 * capacity)

    if resident_bytes + tile_bytes > budget:
        # TODO(synk): add a feature-tiled Pallas variant (extra "arbitrary"
        # grid axes over h/out with a VMEM accumulator + pl.when init/finalize)
        # for weights that do not fit VMEM; fall back to fused XLA for now.
        xf = _maybe_pad(x, 0, in_p - in_dim)
        h1 = jnp.maximum(jnp.dot(xf.astype(mm_dtype), p["w1"],
                                 preferred_element_type=jnp.float32) + p["b1"], 0.0)
        h2 = jnp.maximum(jnp.dot(h1.astype(mm_dtype), p["w2"],
                                 preferred_element_type=jnp.float32) + p["b2"], 0.0)
        h3 = jnp.maximum(jnp.dot(h2.astype(mm_dtype), p["w3"],
                                 preferred_element_type=jnp.float32) + p["b3"], 0.0)
        out = jnp.dot(h3.astype(mm_dtype), p["w4"],
                      preferred_element_type=jnp.float32) + p["b4"]
        return (out[:, :out_dim],
                [h1[:, :h_dim].astype(activation_dtype),
                 h2[:, :h_dim].astype(activation_dtype),
                 h3[:, :h_dim].astype(activation_dtype)])

    # Limit sized for the worst case (weights double-buffered) but never above
    # 85% of the chip's physical VMEM.
    vmem_limit = int(min(max(2 * resident_bytes + tile_bytes + (8 << 20), 32 << 20),
                         budget))

    # --- scheduler hint -------------------------------------------------------
    flops = 2 * batch_p * weight_elems
    bytes_accessed = (4 * batch_p * in_p + mm_itemsize * weight_elems
                      + 4 * bias_elems + 4 * batch_p * out_p
                      + 3 * act_itemsize * batch_p * h_p)
    cost = pl.CostEstimate(flops=int(flops), transcendentals=0,
                           bytes_accessed=int(bytes_accessed))

    x_p = _maybe_pad(x.astype(jnp.float32), batch_p - batch, in_p - in_dim)

    out_shapes = (
        jax.ShapeDtypeStruct((batch_p, out_p), jnp.float32),        # final out
        jax.ShapeDtypeStruct((batch_p, h_p), activation_dtype),     # relu1
        jax.ShapeDtypeStruct((batch_p, h_p), activation_dtype),     # relu2
        jax.ShapeDtypeStruct((batch_p, h_p), activation_dtype),     # relu3
    )

    def make_call(single_buffer_weights):
        def tiled(cols):                    # batch-tiled, double-buffered DMA
            return pl.BlockSpec((tb, cols), lambda i: (i, 0))

        def resident(shape):                # grid-invariant -> VMEM-resident
            if single_buffer_weights:
                return pl.BlockSpec(shape, lambda i: (0, 0),
                                    pipeline_mode=pl.Buffered(1))
            return pl.BlockSpec(shape, lambda i: (0, 0))

        in_specs = [
            tiled(in_p),
            resident((in_p, h_p)), resident((1, h_p)),
            resident((h_p, h_p)), resident((1, h_p)),
            resident((h_p, h_p)), resident((1, h_p)),
            resident((h_p, out_p)), resident((1, out_p)),
        ]
        out_specs = (tiled(out_p), tiled(h_p), tiled(h_p), tiled(h_p))
        return pl.pallas_call(
            mlp_kernel,
            out_shape=out_shapes,
            grid=(nsteps,),
            in_specs=in_specs,
            out_specs=out_specs,
            compiler_params=pltpu.CompilerParams(
                dimension_semantics=("parallel",),
                vmem_limit_bytes=vmem_limit),
            cost_estimate=cost,
        )

    args = (x_p, p["w1"], p["b1"], p["w2"], p["b2"],
            p["w3"], p["b3"], p["w4"], p["b4"])
    try:
        out, h1, h2, h3 = make_call(True)(*args)
    except Exception:
        # Older jax without pipeline_mode / Buffered(1): default double-buffer.
        out, h1, h2, h3 = make_call(False)(*args)

    return (out[:batch, :out_dim],
            [h1[:batch, :h_dim], h2[:batch, :h_dim], h3[:batch, :h_dim]])


# ----------------------------------------------------------------------------
# Pure-JAX reference + deterministic init (mimics nn.Linear init).
# ----------------------------------------------------------------------------
def mlp_forward_ref(x, params):
    h1 = jnp.maximum(x @ params["w1"] + params["b1"], 0.0)
    h2 = jnp.maximum(h1 @ params["w2"] + params["b2"], 0.0)
    h3 = jnp.maximum(h2 @ params["w3"] + params["b3"], 0.0)
    out = h3 @ params["w4"] + params["b4"]
    return out, [h1, h2, h3]


def init_params(key, in_dim, h_dim, out_dim):
    dims = [(in_dim, h_dim), (h_dim, h_dim), (h_dim, h_dim), (h_dim, out_dim)]
    params = {}
    for i, (fi, fo) in enumerate(dims, start=1):
        key, kw, kb = jax.random.split(key, 3)
        bound = 1.0 / (fi ** 0.5)
        params[f"w{i}"] = jax.random.uniform(
            kw, (fi, fo), jnp.float32, minval=-bound, maxval=bound)
        params[f"b{i}"] = jax.random.uniform(
            kb, (1, fo), jnp.float32, minval=-bound, maxval=bound)
    return params


if __name__ == "__main__":
    batch, in_dim, h_dim, out_dim = 8, 32, 32, 16

    key = jax.random.PRNGKey(0)
    key, kx = jax.random.split(key)
    x = jax.random.normal(kx, (batch, in_dim), jnp.float32)
    params = init_params(key, in_dim, h_dim, out_dim)

    # Pad/cast weights once (hoisted out of the hot path).
    padded_f32, dims = prepare_params(params, matmul_dtype=jnp.float32)

    out, tracked = mlp_forward(x, padded_f32, logical_dims=dims)
    out = jax.block_until_ready(out)
    tracked = [jax.block_until_ready(t) for t in tracked]

    # Correctness vs pure-JAX reference (f32 path matches PyTorch numerics).
    out_ref, tracked_ref = mlp_forward_ref(x, params)
    assert jnp.allclose(out, out_ref, atol=1e-5, rtol=1e-5)
    for t, tr in zip(tracked, tracked_ref):
        assert jnp.allclose(t, tr, atol=1e-5, rtol=1e-5)

    # Optional bf16-MXU path (gated behind matmul_dtype; slight numeric drift).
    padded_bf16, dims_bf16 = prepare_params(params, matmul_dtype=jnp.bfloat16)
    out_bf16, _ = mlp_forward(x, padded_bf16, logical_dims=dims_bf16)
    out_bf16 = jax.block_until_ready(out_bf16)
    assert jnp.allclose(out_bf16, out_ref, atol=5e-2, rtol=5e-2)

    print("KERNEL_OK")
</pallas_src>

<mosaic_0001>
module attributes {stable_mosaic.version = 11 : i64} {
  func.func @mlp_kernel(%arg0: i32, %arg1: memref<8x128xf32, #tpu.memory_space<vmem>>, %arg2: memref<128x128xf32, #tpu.memory_space<vmem>>, %arg3: memref<1x128xf32, #tpu.memory_space<vmem>>, %arg4: memref<128x128xf32, #tpu.memory_space<vmem>>, %arg5: memref<1x128xf32, #tpu.memory_space<vmem>>, %arg6: memref<128x128xf32, #tpu.memory_space<vmem>>, %arg7: memref<1x128xf32, #tpu.memory_space<vmem>>, %arg8: memref<128x128xf32, #tpu.memory_space<vmem>>, %arg9: memref<1x128xf32, #tpu.memory_space<vmem>>, %arg10: memref<8x128xf32, #tpu.memory_space<vmem>>, %arg11: memref<8x128xf32, #tpu.memory_space<vmem>>, %arg12: memref<8x128xf32, #tpu.memory_space<vmem>>, %arg13: memref<8x128xf32, #tpu.memory_space<vmem>>) attributes {dimension_semantics = [#tpu.dimension_semantics<parallel>], iteration_bounds = array<i64: 1>, scalar_prefetch = 0 : i64, scratch_operands = 0 : i64, tpu.core_type = #tpu.core_type<tc>, window_params = [{transform_indices = @transform_0, window_bounds = array<i64: 8, 128>}, {pipeline_mode = #tpu.pipeline_mode<synchronous>, transform_indices = @transform_1, window_bounds = array<i64: 128, 128>}, {pipeline_mode = #tpu.pipeline_mode<synchronous>, transform_indices = @transform_2, window_bounds = array<i64: 1, 128>}, {pipeline_mode = #tpu.pipeline_mode<synchronous>, transform_indices = @transform_3, window_bounds = array<i64: 128, 128>}, {pipeline_mode = #tpu.pipeline_mode<synchronous>, transform_indices = @transform_4, window_bounds = array<i64: 1, 128>}, {pipeline_mode = #tpu.pipeline_mode<synchronous>, transform_indices = @transform_5, window_bounds = array<i64: 128, 128>}, {pipeline_mode = #tpu.pipeline_mode<synchronous>, transform_indices = @transform_6, window_bounds = array<i64: 1, 128>}, {pipeline_mode = #tpu.pipeline_mode<synchronous>, transform_indices = @transform_7, window_bounds = array<i64: 128, 128>}, {pipeline_mode = #tpu.pipeline_mode<synchronous>, transform_indices = @transform_8, window_bounds = array<i64: 1, 128>}, {transform_indices = @transform_9, window_bounds = array<i64: 8, 128>}, {transform_indices = @transform_10, window_bounds = array<i64: 8, 128>}, {transform_indices = @transform_11, window_bounds = array<i64: 8, 128>}, {transform_indices = @transform_12, window_bounds = array<i64: 8, 128>}]} {
    %c0 = arith.constant 0 : index
    %c0_0 = arith.constant 0 : index
    %0 = vector.load %arg1[%c0, %c0_0] : memref<8x128xf32, #tpu.memory_space<vmem>>, vector<8x128xf32>
    %c0_1 = arith.constant 0 : index
    %c0_2 = arith.constant 0 : index
    %1 = vector.load %arg2[%c0_1, %c0_2] : memref<128x128xf32, #tpu.memory_space<vmem>>, vector<128x128xf32>
    %cst = arith.constant dense<0.000000e+00> : vector<8x128xf32>
    %2 = tpu.matmul %0, %1, %cst {dimension_numbers = #tpu.dot_dimension_numbers<[1], [0], [0], [1], [0, 0, 1, 1], [], []>} : vector<8x128xf32>, vector<128x128xf32>, vector<8x128xf32> -> vector<8x128xf32>
    %c0_3 = arith.constant 0 : index
    %c0_4 = arith.constant 0 : index
    %3 = vector.load %arg3[%c0_3, %c0_4] : memref<1x128xf32, #tpu.memory_space<vmem>>, vector<1x128xf32>
    %4 = vector.broadcast %3 : vector<1x128xf32> to vector<8x128xf32>
    %5 = arith.addf %2, %4 : vector<8x128xf32>
    %cst_5 = arith.constant 0.000000e+00 : f32
    %6 = vector.broadcast %cst_5 : f32 to vector<8x128xf32>
    %7 = arith.maximumf %5, %6 : vector<8x128xf32>
    %c0_6 = arith.constant 0 : index
    %c0_7 = arith.constant 0 : index
    %8 = vector.load %arg11[%c0_6, %c0_7] : memref<8x128xf32, #tpu.memory_space<vmem>>, vector<8x128xf32>
    tpu.vector_store %arg11[%c0_6, %c0_7], %7 {strides = array<i32>} : memref<8x128xf32, #tpu.memory_space<vmem>>, vector<8x128xf32>,
    %c0_8 = arith.constant 0 : index
    %c0_9 = arith.constant 0 : index
    %9 = vector.load %arg4[%c0_8, %c0_9] : memref<128x128xf32, #tpu.memory_space<vmem>>, vector<128x128xf32>
    %cst_10 = arith.constant dense<0.000000e+00> : vector<8x128xf32>
    %10 = tpu.matmul %7, %9, %cst_10 {dimension_numbers = #tpu.dot_dimension_numbers<[1], [0], [0], [1], [0, 0, 1, 1], [], []>} : vector<8x128xf32>, vector<128x128xf32>, vector<8x128xf32> -> vector<8x128xf32>
    %c0_11 = arith.constant 0 : index
    %c0_12 = arith.constant 0 : index
    %11 = vector.load %arg5[%c0_11, %c0_12] : memref<1x128xf32, #tpu.memory_space<vmem>>, vector<1x128xf32>
    %12 = vector.broadcast %11 : vector<1x128xf32> to vector<8x128xf32>
    %13 = arith.addf %10, %12 : vector<8x128xf32>
    %cst_13 = arith.constant 0.000000e+00 : f32
    %14 = vector.broadcast %cst_13 : f32 to vector<8x128xf32>
    %15 = arith.maximumf %13, %14 : vector<8x128xf32>
    %c0_14 = arith.constant 0 : index
    %c0_15 = arith.constant 0 : index
    %16 = vector.load %arg12[%c0_14, %c0_15] : memref<8x128xf32, #tpu.memory_space<vmem>>, vector<8x128xf32>
    tpu.vector_store %arg12[%c0_14, %c0_15], %15 {strides = array<i32>} : memref<8x128xf32, #tpu.memory_space<vmem>>, vector<8x128xf32>,
    %c0_16 = arith.constant 0 : index
    %c0_17 = arith.constant 0 : index
    %17 = vector.load %arg6[%c0_16, %c0_17] : memref<128x128xf32, #tpu.memory_space<vmem>>, vector<128x128xf32>
    %cst_18 = arith.constant dense<0.000000e+00> : vector<8x128xf32>
    %18 = tpu.matmul %15, %17, %cst_18 {dimension_numbers = #tpu.dot_dimension_numbers<[1], [0], [0], [1], [0, 0, 1, 1], [], []>} : vector<8x128xf32>, vector<128x128xf32>, vector<8x128xf32> -> vector<8x128xf32>
    %c0_19 = arith.constant 0 : index
    %c0_20 = arith.constant 0 : index
    %19 = vector.load %arg7[%c0_19, %c0_20] : memref<1x128xf32, #tpu.memory_space<vmem>>, vector<1x128xf32>
    %20 = vector.broadcast %19 : vector<1x128xf32> to vector<8x128xf32>
    %21 = arith.addf %18, %20 : vector<8x128xf32>
    %cst_21 = arith.constant 0.000000e+00 : f32
    %22 = vector.broadcast %cst_21 : f32 to vector<8x128xf32>
    %23 = arith.maximumf %21, %22 : vector<8x128xf32>
    %c0_22 = arith.constant 0 : index
    %c0_23 = arith.constant 0 : index
    %24 = vector.load %arg13[%c0_22, %c0_23] : memref<8x128xf32, #tpu.memory_space<vmem>>, vector<8x128xf32>
    tpu.vector_store %arg13[%c0_22, %c0_23], %23 {strides = array<i32>} : memref<8x128xf32, #tpu.memory_space<vmem>>, vector<8x128xf32>,
    %c0_24 = arith.constant 0 : index
    %c0_25 = arith.constant 0 : index
    %25 = vector.load %arg8[%c0_24, %c0_25] : memref<128x128xf32, #tpu.memory_space<vmem>>, vector<128x128xf32>
    %cst_26 = arith.constant dense<0.000000e+00> : vector<8x128xf32>
    %26 = tpu.matmul %23, %25, %cst_26 {dimension_numbers = #tpu.dot_dimension_numbers<[1], [0], [0], [1], [0, 0, 1, 1], [], []>} : vector<8x128xf32>, vector<128x128xf32>, vector<8x128xf32> -> vector<8x128xf32>
    %c0_27 = arith.constant 0 : index
    %c0_28 = arith.constant 0 : index
    %27 = vector.load %arg9[%c0_27, %c0_28] : memref<1x128xf32, #tpu.memory_space<vmem>>, vector<1x128xf32>
    %28 = vector.broadcast %27 : vector<1x128xf32> to vector<8x128xf32>
    %29 = arith.addf %26, %28 : vector<8x128xf32>
    %c0_29 = arith.constant 0 : index
    %c0_30 = arith.constant 0 : index
    %30 = vector.load %arg10[%c0_29, %c0_30] : memref<8x128xf32, #tpu.memory_space<vmem>>, vector<8x128xf32>
    tpu.vector_store %arg10[%c0_29, %c0_30], %29 {strides = array<i32>} : memref<8x128xf32, #tpu.memory_space<vmem>>, vector<8x128xf32>,
    return
  }
  func.func @transform_0(%arg0: i32) -> (i32, i32) {
    %c0_i32 = arith.constant 0 : i32
    %c0_i32_0 = arith.constant 0 : i32
    return %arg0, %c0_i32 : i32, i32
  }
  func.func @transform_1(%arg0: i32) -> (i32, i32) {
    %c0_i32 = arith.constant 0 : i32
    %c0_i32_0 = arith.constant 0 : i32
    %c0_i32_1 = arith.constant 0 : i32
    return %c0_i32, %c0_i32_0 : i32, i32
  }
  func.func @transform_2(%arg0: i32) -> (i32, i32) {
    %c0_i32 = arith.constant 0 : i32
    %c0_i32_0 = arith.constant 0 : i32
    %c0_i32_1 = arith.constant 0 : i32
    return %c0_i32, %c0_i32_0 : i32, i32
  }
  func.func @transform_3(%arg0: i32) -> (i32, i32) {
    %c0_i32 = arith.constant 0 : i32
    %c0_i32_0 = arith.constant 0 : i32
    %c0_i32_1 = arith.constant 0 : i32
    return %c0_i32, %c0_i32_0 : i32, i32
  }
  func.func @transform_4(%arg0: i32) -> (i32, i32) {
    %c0_i32 = arith.constant 0 : i32
    %c0_i32_0 = arith.constant 0 : i32
    %c0_i32_1 = arith.constant 0 : i32
    return %c0_i32, %c0_i32_0 : i32, i32
  }
  func.func @transform_5(%arg0: i32) -> (i32, i32) {
    %c0_i32 = arith.constant 0 : i32
    %c0_i32_0 = arith.constant 0 : i32
    %c0_i32_1 = arith.constant 0 : i32
    return %c0_i32, %c0_i32_0 : i32, i32
  }
  func.func @transform_6(%arg0: i32) -> (i32, i32) {
    %c0_i32 = arith.constant 0 : i32
    %c0_i32_0 = arith.constant 0 : i32
    %c0_i32_1 = arith.constant 0 : i32
    return %c0_i32, %c0_i32_0 : i32, i32
  }
  func.func @transform_7(%arg0: i32) -> (i32, i32) {
    %c0_i32 = arith.constant 0 : i32
    %c0_i32_0 = arith.constant 0 : i32
    %c0_i32_1 = arith.constant 0 : i32
    return %c0_i32, %c0_i32_0 : i32, i32
  }
  func.func @transform_8(%arg0: i32) -> (i32, i32) {
    %c0_i32 = arith.constant 0 : i32
    %c0_i32_0 = arith.constant 0 : i32
    %c0_i32_1 = arith.constant 0 : i32
    return %c0_i32, %c0_i32_0 : i32, i32
  }
  func.func @transform_9(%arg0: i32) -> (i32, i32) {
    %c0_i32 = arith.constant 0 : i32
    %c0_i32_0 = arith.constant 0 : i32
    return %arg0, %c0_i32 : i32, i32
  }
  func.func @transform_10(%arg0: i32) -> (i32, i32) {
    %c0_i32 = arith.constant 0 : i32
    %c0_i32_0 = arith.constant 0 : i32
    return %arg0, %c0_i32 : i32, i32
  }
  func.func @transform_11(%arg0: i32) -> (i32, i32) {
    %c0_i32 = arith.constant 0 : i32
    %c0_i32_0 = arith.constant 0 : i32
    return %arg0, %c0_i32 : i32, i32
  }
  func.func @transform_12(%arg0: i32) -> (i32, i32) {
    %c0_i32 = arith.constant 0 : i32
    %c0_i32_0 = arith.constant 0 : i32
    return %arg0, %c0_i32 : i32, i32
  }
}

module attributes {stable_mosaic.version = 11 : i64} {
  func.func @mlp_kernel(%arg0: i32, %arg1: memref<8x128xf32, #tpu.memory_space<vmem>>, %arg2: memref<128x128xf32, #tpu.memory_space<vmem>>, %arg3: memref<1x128xf32, #tpu.memory_space<vmem>>, %arg4: memref<128x128xf32, #tpu.memory_space<vmem>>, %arg5: memref<1x128xf32, #tpu.memory_space<vmem>>, %arg6: memref<128x128xf32, #tpu.memory_space<vmem>>, %arg7: memref<1x128xf32, #tpu.memory_space<vmem>>, %arg8: memref<128x128xf32, #tpu.memory_space<vmem>>, %arg9: memref<1x128xf32, #tpu.memory_space<vmem>>, %arg10: memref<8x128xf32, #tpu.memory_space<vmem>>, %arg11: memref<8x128xf32, #tpu.memory_space<vmem>>, %arg12: memref<8x128xf32, #tpu.memory_space<vmem>>, %arg13: memref<8x128xf32, #tpu.memory_space<vmem>>) attributes {dimension_semantics = [#tpu.dimension_semantics<parallel>], iteration_bounds = array<i64: 1>, scalar_prefetch = 0 : i64, scratch_operands = 0 : i64, tpu.core_type = #tpu.core_type<tc>, window_params = [{transform_indices = @transform_0, window_bounds = array<i64: 8, 128>}, {pipeline_mode = #tpu.pipeline_mode<synchronous>, transform_indices = @transform_1, window_bounds = array<i64: 128, 128>}, {pipeline_mode = #tpu.pipeline_mode<synchronous>, transform_indices = @transform_2, window_bounds = array<i64: 1, 128>}, {pipeline_mode = #tpu.pipeline_mode<synchronous>, transform_indices = @transform_3, window_bounds = array<i64: 128, 128>}, {pipeline_mode = #tpu.pipeline_mode<synchronous>, transform_indices = @transform_4, window_bounds = array<i64: 1, 128>}, {pipeline_mode = #tpu.pipeline_mode<synchronous>, transform_indices = @transform_5, window_bounds = array<i64: 128, 128>}, {pipeline_mode = #tpu.pipeline_mode<synchronous>, transform_indices = @transform_6, window_bounds = array<i64: 1, 128>}, {pipeline_mode = #tpu.pipeline_mode<synchronous>, transform_indices = @transform_7, window_bounds = array<i64: 128, 128>}, {pipeline_mode = #tpu.pipeline_mode<synchronous>, transform_indices = @transform_8, window_bounds = array<i64: 1, 128>}, {transform_indices = @transform_9, window_bounds = array<i64: 8, 128>}, {transform_indices = @transform_10, window_bounds = array<i64: 8, 128>}, {transform_indices = @transform_11, window_bounds = array<i64: 8, 128>}, {transform_indices = @transform_12, window_bounds = array<i64: 8, 128>}]} {
    %c0 = arith.constant 0 : index
    %c0_0 = arith.constant 0 : index
    %0 = vector.load %arg1[%c0, %c0_0] : memref<8x128xf32, #tpu.memory_space<vmem>>, vector<8x128xf32>
    %c0_1 = arith.constant 0 : index
    %c0_2 = arith.constant 0 : index
    %1 = vector.load %arg2[%c0_1, %c0_2] : memref<128x128xf32, #tpu.memory_space<vmem>>, vector<128x128xf32>
    %cst = arith.constant dense<0.000000e+00> : vector<8x128xf32>
    %2 = tpu.matmul %0, %1, %cst {dimension_numbers = #tpu.dot_dimension_numbers<[1], [0], [0], [1], [0, 0, 1, 1], [], []>} : vector<8x128xf32>, vector<128x128xf32>, vector<8x128xf32> -> vector<8x128xf32>
    %c0_3 = arith.constant 0 : index
    %c0_4 = arith.constant 0 : index
    %3 = vector.load %arg3[%c0_3, %c0_4] : memref<1x128xf32, #tpu.memory_space<vmem>>, vector<1x128xf32>
    %4 = vector.broadcast %3 : vector<1x128xf32> to vector<8x128xf32>
    %5 = arith.addf %2, %4 : vector<8x128xf32>
    %cst_5 = arith.constant 0.000000e+00 : f32
    %6 = vector.broadcast %cst_5 : f32 to vector<8x128xf32>
    %7 = arith.maximumf %5, %6 : vector<8x128xf32>
    %c0_6 = arith.constant 0 : index
    %c0_7 = arith.constant 0 : index
    %8 = vector.load %arg11[%c0_6, %c0_7] : memref<8x128xf32, #tpu.memory_space<vmem>>, vector<8x128xf32>
    tpu.vector_store %arg11[%c0_6, %c0_7], %7 {strides = array<i32>} : memref<8x128xf32, #tpu.memory_space<vmem>>, vector<8x128xf32>,
    %c0_8 = arith.constant 0 : index
    %c0_9 = arith.constant 0 : index
    %9 = vector.load %arg4[%c0_8, %c0_9] : memref<128x128xf32, #tpu.memory_space<vmem>>, vector<128x128xf32>
    %cst_10 = arith.constant dense<0.000000e+00> : vector<8x128xf32>
    %10 = tpu.matmul %7, %9, %cst_10 {dimension_numbers = #tpu.dot_dimension_numbers<[1], [0], [0], [1], [0, 0, 1, 1], [], []>} : vector<8x128xf32>, vector<128x128xf32>, vector<8x128xf32> -> vector<8x128xf32>
    %c0_11 = arith.constant 0 : index
    %c0_12 = arith.constant 0 : index
    %11 = vector.load %arg5[%c0_11, %c0_12] : memref<1x128xf32, #tpu.memory_space<vmem>>, vector<1x128xf32>
    %12 = vector.broadcast %11 : vector<1x128xf32> to vector<8x128xf32>
    %13 = arith.addf %10, %12 : vector<8x128xf32>
    %cst_13 = arith.constant 0.000000e+00 : f32
    %14 = vector.broadcast %cst_13 : f32 to vector<8x128xf32>
    %15 = arith.maximumf %13, %14 : vector<8x128xf32>
    %c0_14 = arith.constant 0 : index
    %c0_15 = arith.constant 0 : index
    %16 = vector.load %arg12[%c0_14, %c0_15] : memref<8x128xf32, #tpu.memory_space<vmem>>, vector<8x128xf32>
    tpu.vector_store %arg12[%c0_14, %c0_15], %15 {strides = array<i32>} : memref<8x128xf32, #tpu.memory_space<vmem>>, vector<8x128xf32>,
    %c0_16 = arith.constant 0 : index
    %c0_17 = arith.constant 0 : index
    %17 = vector.load %arg6[%c0_16, %c0_17] : memref<128x128xf32, #tpu.memory_space<vmem>>, vector<128x128xf32>
    %cst_18 = arith.constant dense<0.000000e+00> : vector<8x128xf32>
    %18 = tpu.matmul %15, %17, %cst_18 {dimension_numbers = #tpu.dot_dimension_numbers<[1], [0], [0], [1], [0, 0, 1, 1], [], []>} : vector<8x128xf32>, vector<128x128xf32>, vector<8x128xf32> -> vector<8x128xf32>
    %c0_19 = arith.constant 0 : index
    %c0_20 = arith.constant 0 : index
    %19 = vector.load %arg7[%c0_19, %c0_20] : memref<1x128xf32, #tpu.memory_space<vmem>>, vector<1x128xf32>
    %20 = vector.broadcast %19 : vector<1x128xf32> to vector<8x128xf32>
    %21 = arith.addf %18, %20 : vector<8x128xf32>
    %cst_21 = arith.constant 0.000000e+00 : f32
    %22 = vector.broadcast %cst_21 : f32 to vector<8x128xf32>
    %23 = arith.maximumf %21, %22 : vector<8x128xf32>
    %c0_22 = arith.constant 0 : index
    %c0_23 = arith.constant 0 : index
    %24 = vector.load %arg13[%c0_22, %c0_23] : memref<8x128xf32, #tpu.memory_space<vmem>>, vector<8x128xf32>
    tpu.vector_store %arg13[%c0_22, %c0_23], %23 {strides = array<i32>} : memref<8x128xf32, #tpu.memory_space<vmem>>, vector<8x128xf32>,
    %c0_24 = arith.constant 0 : index
    %c0_25 = arith.constant 0 : index
    %25 = vector.load %arg8[%c0_24, %c0_25] : memref<128x128xf32, #tpu.memory_space<vmem>>, vector<128x128xf32>
    %cst_26 = arith.constant dense<0.000000e+00> : vector<8x128xf32>
    %26 = tpu.matmul %23, %25, %cst_26 {dimension_numbers = #tpu.dot_dimension_numbers<[1], [0], [0], [1], [0, 0, 1, 1], [], []>} : vector<8x128xf32>, vector<128x128xf32>, vector<8x128xf32> -> vector<8x128xf32>
    %c0_27 = arith.constant 0 : index
    %c0_28 = arith.constant 0 : index
    %27 = vector.load %arg9[%c0_27, %c0_28] : memref<1x128xf32, #tpu.memory_space<vmem>>, vector<1x128xf32>
    %28 = vector.broadcast %27 : vector<1x128xf32> to vector<8x128xf32>
    %29 = arith.addf %26, %28 : vector<8x128xf32>
    %c0_29 = arith.constant 0 : index
    %c0_30 = arith.constant 0 : index
    %30 = vector.load %arg10[%c0_29, %c0_30] : memref<8x128xf32, #tpu.memory_space<vmem>>, vector<8x128xf32>
    tpu.vector_store %arg10[%c0_29, %c0_30], %29 {strides = array<i32>} : memref<8x128xf32, #tpu.memory_space<vmem>>, vector<8x128xf32>,
    return
  }
  func.func @transform_0(%arg0: i32) -> (i32, i32) {
    %c0_i32 = arith.constant 0 : i32
    %c0_i32_0 = arith.constant 0 : i32
    return %arg0, %c0_i32 : i32, i32
  }
  func.func @transform_1(%arg0: i32) -> (i32, i32) {
    %c0_i32 = arith.constant 0 : i32
    %c0_i32_0 = arith.constant 0 : i32
    %c0_i32_1 = arith.constant 0 : i32
    return %c0_i32, %c0_i32_0 : i32, i32
  }
  func.func @transform_2(%arg0: i32) -> (i32, i32) {
    %c0_i32 = arith.constant 0 : i32
    %c0_i32_0 = arith.constant 0 : i32
    %c0_i32_1 = arith.constant 0 : i32
    return %c0_i32, %c0_i32_0 : i32, i32
  }
  func.func @transform_3(%arg0: i32) -> (i32, i32) {
    %c0_i32 = arith.constant 0 : i32
    %c0_i32_0 = arith.constant 0 : i32
    %c0_i32_1 = arith.constant 0 : i32
    return %c0_i32, %c0_i32_0 : i32, i32
  }
  func.func @transform_4(%arg0: i32) -> (i32, i32) {
    %c0_i32 = arith.constant 0 : i32
    %c0_i32_0 = arith.constant 0 : i32
    %c0_i32_1 = arith.constant 0 : i32
    return %c0_i32, %c0_i32_0 : i32, i32
  }
  func.func @transform_5(%arg0: i32) -> (i32, i32) {
    %c0_i32 = arith.constant 0 : i32
    %c0_i32_0 = arith.constant 0 : i32
    %c0_i32_1 = arith.constant 0 : i32
    return %c0_i32, %c0_i32_0 : i32, i32
  }
  func.func @transform_6(%arg0: i32) -> (i32, i32) {
    %c0_i32 = arith.constant 0 : i32
    %c0_i32_0 = arith.constant 0 : i32
    %c0_i32_1 = arith.constant 0 : i32
    return %c0_i32, %c0_i32_0 : i32, i32
  }
  func.func @transform_7(%arg0: i32) -> (i32, i32) {
    %c0_i32 = arith.constant 0 : i32
    %c0_i32_0 = arith.constant 0 : i32
    %c0_i32_1 = arith.constant 0 : i32
    return %c0_i32, %c0_i32_0 : i32, i32
  }
  func.func @transform_8(%arg0: i32) -> (i32, i32) {
    %c0_i32 = arith.constant 0 : i32
    %c0_i32_0 = arith.constant 0 : i32
    %c0_i32_1 = arith.constant 0 : i32
    return %c0_i32, %c0_i32_0 : i32, i32
  }
  func.func @transform_9(%arg0: i32) -> (i32, i32) {
    %c0_i32 = arith.constant 0 : i32
    %c0_i32_0 = arith.constant 0 : i32
    return %arg0, %c0_i32 : i32, i32
  }
  func.func @transform_10(%arg0: i32) -> (i32, i32) {
    %c0_i32 = arith.constant 0 : i32
    %c0_i32_0 = arith.constant 0 : i32
    return %arg0, %c0_i32 : i32, i32
  }
  func.func @transform_11(%arg0: i32) -> (i32, i32) {
    %c0_i32 = arith.constant 0 : i32
    %c0_i32_0 = arith.constant 0 : i32
    return %arg0, %c0_i32 : i32, i32
  }
  func.func @transform_12(%arg0: i32) -> (i32, i32) {
    %c0_i32 = arith.constant 0 : i32
    %c0_i32_0 = arith.constant 0 : i32
    return %arg0, %c0_i32 : i32, i32
  }
}

</mosaic_0001>

<llo_original>
// kernel: tpu_custom_call.1
$region0: #{tpu_custom_call.1}
  #allocation0 [shape = 'u32[]', space=smem, size = 0x4, offset = 0x4, fixed_abs, tag = 'smem constant byte address 0x4 - core index']
  #allocation1 [shape = 'u32[144,128]{1,0:T(1,128)}', space=vmem, size = 0x12000, scoped, tag = 'internal scratch']
  %s0 = inlined_call_operand.hbm [shape: f32[8,128], index: 0, kind: input, shape index: {}]
  %s1 = inlined_call_operand.hbm [shape: f32[128,128], index: 1, kind: input, shape index: {}]
  %s2 = inlined_call_operand.vmem [shape: f32[1,128], index: 2, kind: input, shape index: {}]
  %s3 = inlined_call_operand.hbm [shape: f32[128,128], index: 3, kind: input, shape index: {}]
  %s4 = inlined_call_operand.vmem [shape: f32[1,128], index: 4, kind: input, shape index: {}]
  %s5 = inlined_call_operand.hbm [shape: f32[128,128], index: 5, kind: input, shape index: {}]
  %s6 = inlined_call_operand.vmem [shape: f32[1,128], index: 6, kind: input, shape index: {}]
  %s7 = inlined_call_operand.hbm [shape: f32[128,128], index: 7, kind: input, shape index: {}]
  %s8 = inlined_call_operand.vmem [shape: f32[1,128], index: 8, kind: input, shape index: {}]
  %s9 = inlined_call_operand.hbm [shape: f32[8,128], index: 9, kind: output, shape index: {0}]
  %s10 = inlined_call_operand.hbm [shape: f32[8,128], index: 10, kind: output, shape index: {1}]
  %s11 = inlined_call_operand.hbm [shape: f32[8,128], index: 11, kind: output, shape index: {2}]
  %s12 = inlined_call_operand.hbm [shape: f32[8,128], index: 12, kind: output, shape index: {3}]
  %13 = xla_tuple %s9, %s10, %s11, %s12
  %s14 = sld [smem:[#allocation0]]
  $region90: #{tpu_custom_call.1} parent=0
    _
  %s16 = ssub.s32 1, %s14
  %s17 = scalar_select 0, %s16, %s14
  $region1: #{tpu_custom_call.1} parent=0
    #allocation2 [shape = 'u8[4096]{0}', space=vmem, size = 0x1000, scoped, tag = 'input window, operand 0, single buffered']
    #allocation3 [shape = 's32[1]{0}', space=sflag, size = 0x4, scoped, tag = 'scoped memory for tpu_custom_call.1']
    #allocation4 [shape = 's32[1]{0}', space=sflag, size = 0x4, scoped, tag = 'scoped memory for tpu_custom_call.1']
    #allocation5 [shape = 'u8[65536]{0}', space=vmem, size = 0x10000, scoped, tag = 'input window, operand 1, single buffered']
    #allocation6 [shape = 's32[1]{0}', space=sflag, size = 0x4, scoped, tag = 'scoped memory for tpu_custom_call.1']
    #allocation7 [shape = 'u8[65536]{0}', space=vmem, size = 0x10000, scoped, tag = 'input window, operand 3, single buffered']
    #allocation8 [shape = 'u8[65536]{0}', space=vmem, size = 0x10000, scoped, tag = 'input window, operand 5, single buffered']
    #allocation9 [shape = 's32[1]{0}', space=sflag, size = 0x4, scoped, tag = 'scoped memory for tpu_custom_call.1']
    #allocation10 [shape = 'u8[65536]{0}', space=vmem, size = 0x10000, scoped, tag = 'input window, operand 7, single buffered']
    #allocation11 [shape = 'u8[4096]{0}', space=vmem, size = 0x1000, scoped, tag = 'output window, operand 0, single buffered']
    #allocation12 [shape = 'u8[4096]{0}', space=vmem, size = 0x1000, scoped, tag = 'output window, operand 1, single buffered']
    #allocation13 [shape = 's32[1]{0}', space=sflag, size = 0x4, scoped, tag = 'scoped memory for tpu_custom_call.1']
    #allocation14 [shape = 'u8[4096]{0}', space=vmem, size = 0x1000, scoped, tag = 'output window, operand 2, single buffered']
    #allocation15 [shape = 'u8[4096]{0}', space=vmem, size = 0x1000, scoped, tag = 'output window, operand 3, single buffered']
    #allocation16 [shape = 's32[1]{0}', space=sflag, size = 0x4, scoped, tag = 'scoped memory for tpu_custom_call.1']
    %18 = vsyncpa [#allocation3], 0
    %19 = vsyncpa [#allocation6], 0
    %20 = vsyncpa [#allocation9], 0
    %21 = vsyncpa [#allocation4], 0
    %22 = vsyncpa [#allocation13], 0
    %23 = vsyncpa [#allocation16], 0
    // Predicated region
    $region2: #{tpu_custom_call.1} parent=1 // pred_check
      _
    $region3: #{tpu_custom_call.1} parent=1 // pred_check_branch
      %25 = sbr.rel (0) target = $region5
    $region4: #{tpu_custom_call.1} parent=1 // pred_region
      %s27 = ssub.s32 128, 128
      %28 = vsyncadd [#allocation3], %s27
      %s30 = sshll.u32 [#allocation2], 4
      %s31 = int_to_ptr.vmem [resolvable:$true] %s30
      %33 = dma.hbm_to_vmem [thread:$0]  %s0, 128, %s31, [#allocation3]
    $region5: #{tpu_custom_call.1} parent=1 // pred_fallthru
      _
    // Predicated region
    $region6: #{tpu_custom_call.1} parent=1 // pred_check
      _
    $region7: #{tpu_custom_call.1} parent=1 // pred_check_branch
      %35 = sbr.rel (0) target = $region9
    $region8: #{tpu_custom_call.1} parent=1 // pred_region
      %s37 = ssub.s32 2048, 2048
      %38 = vsyncadd [#allocation6], %s37
      %s39 = sshll.u32 [#allocation5], 4
      %s40 = int_to_ptr.vmem [resolvable:$true] %s39
      %45 = dma.hbm_to_vmem [thread:$0]  %s1, 2048, %s40, [#allocation6], 128, 128, 8
    $region9: #{tpu_custom_call.1} parent=1 // pred_fallthru
      _
    // Predicated region
    $region10: #{tpu_custom_call.1} parent=1 // pred_check
      _
    $region11: #{tpu_custom_call.1} parent=1 // pred_check_branch
      %47 = sbr.rel (0) target = $region13
    $region12: #{tpu_custom_call.1} parent=1 // pred_region
      _
    $region13: #{tpu_custom_call.1} parent=1 // pred_fallthru
      _
    // Predicated region
    $region14: #{tpu_custom_call.1} parent=1 // pred_check
      _
    $region15: #{tpu_custom_call.1} parent=1 // pred_check_branch
      %49 = sbr.rel (0) target = $region17
    $region16: #{tpu_custom_call.1} parent=1 // pred_region
      %s51 = ssub.s32 2048, 2048
      %52 = vsyncadd [#allocation6], %s51
      %s53 = sshll.u32 [#allocation7], 4
      %s54 = int_to_ptr.vmem [resolvable:$true] %s53
      %59 = dma.hbm_to_vmem [thread:$0]  %s3, 2048, %s54, [#allocation6], 128, 128, 8
    $region17: #{tpu_custom_call.1} parent=1 // pred_fallthru
      _
    // Predicated region
    $region18: #{tpu_custom_call.1} parent=1 // pred_check
      _
    $region19: #{tpu_custom_call.1} parent=1 // pred_check_branch
      %61 = sbr.rel (0) target = $region21
    $region20: #{tpu_custom_call.1} parent=1 // pred_region
      _
    $region21: #{tpu_custom_call.1} parent=1 // pred_fallthru
      _
    // Predicated region
    $region22: #{tpu_custom_call.1} parent=1 // pred_check
      _
    $region23: #{tpu_custom_call.1} parent=1 // pred_check_branch
      %63 = sbr.rel (0) target = $region25
    $region24: #{tpu_custom_call.1} parent=1 // pred_region
      %s65 = ssub.s32 2048, 2048
      %66 = vsyncadd [#allocation9], %s65
      %s67 = sshll.u32 [#allocation8], 4
      %s68 = int_to_ptr.vmem [resolvable:$true] %s67
      %73 = dma.hbm_to_vmem [thread:$0]  %s5, 2048, %s68, [#allocation9], 128, 128, 8
    $region25: #{tpu_custom_call.1} parent=1 // pred_fallthru
      _
    // Predicated region
    $region26: #{tpu_custom_call.1} parent=1 // pred_check
      _
    $region27: #{tpu_custom_call.1} parent=1 // pred_check_branch
      %75 = sbr.rel (0) target = $region29
    $region28: #{tpu_custom_call.1} parent=1 // pred_region
      _
    $region29: #{tpu_custom_call.1} parent=1 // pred_fallthru
      _
    // Predicated region
    $region30: #{tpu_custom_call.1} parent=1 // pred_check
      _
    $region31: #{tpu_custom_call.1} parent=1 // pred_check_branch
      %77 = sbr.rel (0) target = $region33
    $region32: #{tpu_custom_call.1} parent=1 // pred_region
      %s79 = ssub.s32 2048, 2048
      %80 = vsyncadd [#allocation9], %s79
      %s81 = sshll.u32 [#allocation10], 4
      %s82 = int_to_ptr.vmem [resolvable:$true] %s81
      %87 = dma.hbm_to_vmem [thread:$0]  %s7, 2048, %s82, [#allocation9], 128, 128, 8
    $region33: #{tpu_custom_call.1} parent=1 // pred_fallthru
      _
    // Predicated region
    $region34: #{tpu_custom_call.1} parent=1 // pred_check
      _
    $region35: #{tpu_custom_call.1} parent=1 // pred_check_branch
      %89 = sbr.rel (0) target = $region37
    $region36: #{tpu_custom_call.1} parent=1 // pred_region
      _
    $region37: #{tpu_custom_call.1} parent=1 // pred_fallthru
      _
    // Predicated region
    $region38: #{tpu_custom_call.1} parent=1 // pred_check
      _
    $region39: #{tpu_custom_call.1} parent=1 // pred_check_branch
      %91 = sbr.rel (0) target = $region41
    $region40: #{tpu_custom_call.1} parent=1 // pred_region
      %92 = dma.done [#allocation3], 128
    $region41: #{tpu_custom_call.1} parent=1 // pred_fallthru
      _
    // Predicated region
    $region42: #{tpu_custom_call.1} parent=1 // pred_check
      _
    $region43: #{tpu_custom_call.1} parent=1 // pred_check_branch
      %94 = sbr.rel (0) target = $region45
    $region44: #{tpu_custom_call.1} parent=1 // pred_region
      %95 = dma.done [#allocation6], 2048
    $region45: #{tpu_custom_call.1} parent=1 // pred_fallthru
      _
    // Predicated region
    $region46: #{tpu_custom_call.1} parent=1 // pred_check
      _
    $region47: #{tpu_custom_call.1} parent=1 // pred_check_branch
      %97 = sbr.rel (0) target = $region49
    $region48: #{tpu_custom_call.1} parent=1 // pred_region
      %98 = dma.done [#allocation6], 2048
    $region49: #{tpu_custom_call.1} parent=1 // pred_fallthru
      _
    // Predicated region
    $region50: #{tpu_custom_call.1} parent=1 // pred_check
      _
    $region51: #{tpu_custom_call.1} parent=1 // pred_check_branch
      %100 = sbr.rel (0) target = $region53
    $region52: #{tpu_custom_call.1} parent=1 // pred_region
      %101 = dma.done [#allocation9], 2048
    $region53: #{tpu_custom_call.1} parent=1 // pred_fallthru
      _
    // Predicated region
    $region54: #{tpu_custom_call.1} parent=1 // pred_check
      _
    $region55: #{tpu_custom_call.1} parent=1 // pred_check_branch
      %103 = sbr.rel (0) target = $region57
    $region56: #{tpu_custom_call.1} parent=1 // pred_region
      %104 = dma.done [#allocation9], 2048
    $region57: #{tpu_custom_call.1} parent=1 // pred_fallthru
      _
    %v105 = vld [vmem:[#allocation2] sm:$0xff]
    %v106 = vld [vmem:[#allocation5] sm:$0xff]
    %v107 = vld [vmem:[#allocation5 + $0x8] sm:$0xff]
    %v108 = vld [vmem:[#allocation5 + $0x10] sm:$0xff]
    %v109 = vld [vmem:[#allocation5 + $0x18] sm:$0xff]
    %v110 = vld [vmem:[#allocation5 + $0x20] sm:$0xff]
    %v111 = vld [vmem:[#allocation5 + $0x28] sm:$0xff]
    %v112 = vld [vmem:[#allocation5 + $0x30] sm:$0xff]
    %v113 = vld [vmem:[#allocation5 + $0x38] sm:$0xff]
    %v114 = vld [vmem:[#allocation5 + $0x40] sm:$0xff]
    %v115 = vld [vmem:[#allocation5 + $0x48] sm:$0xff]
    %v116 = vld [vmem:[#allocation5 + $0x50] sm:$0xff]
    %v117 = vld [vmem:[#allocation5 + $0x58] sm:$0xff]
    %v118 = vld [vmem:[#allocation5 + $0x60] sm:$0xff]
    %v119 = vld [vmem:[#allocation5 + $0x68] sm:$0xff]
    %v120 = vld [vmem:[#allocation5 + $0x70] sm:$0xff]
    %v121 = vld [vmem:[#allocation5 + $0x78] sm:$0xff]
    %v122 = vld [vmem:[%s2] sm:$0x1]
    %v124 = vlaneseq
    %v125 = vshrl.u32 %v124, 7
    %v126 = vsub.s32 0, %v125
    %v127 = vrot.slane %v122, %v126
    %129 = vmatprep.subr.mxu0 0.0
    %130 = vmatpush1.msra.mxu0 %v106
    %131 = vmatprep.subr.mxu0 0.0
    %132 = vmatpush1.msra.mxu0 %v107
    %133 = vmatprep.subr.mxu0 0.0
    %134 = vmatpush1.msra.mxu0 %v108
    %135 = vmatprep.subr.mxu0 0.0
    %136 = vmatpush1.msra.mxu0 %v109
    %137 = vmatprep.subr.mxu0 0.0
    %138 = vmatpush1.msra.mxu0 %v110
    %139 = vmatprep.subr.mxu0 0.0
    %140 = vmatpush1.msra.mxu0 %v111
    %141 = vmatprep.subr.mxu0 0.0
    %142 = vmatpush1.msra.mxu0 %v112
    %143 = vmatprep.subr.mxu0 0.0
    %144 = vmatpush1.msra.mxu0 %v113
    %145 = vmatprep.subr.mxu0 0.0
    %146 = vmatpush1.msra.mxu0 %v114
    %147 = vmatprep.subr.mxu0 0.0
    %148 = vmatpush1.msra.mxu0 %v115
    %149 = vmatprep.subr.mxu0 0.0
    %150 = vmatpush1.msra.mxu0 %v116
    %151 = vmatprep.subr.mxu0 0.0
    %152 = vmatpush1.msra.mxu0 %v117
    %153 = vmatprep.subr.mxu0 0.0
    %154 = vmatpush1.msra.mxu0 %v118
    %155 = vmatprep.subr.mxu0 0.0
    %156 = vmatpush1.msra.mxu0 %v119
    %157 = vmatprep.subr.mxu0 0.0
    %158 = vmatpush1.msra.mxu0 %v120
    %159 = vmatprep.subr.mxu0 0.0
    %160 = vmatpush1.msra.mxu0 %v121
    %161 = vmatprep.subr.mxu0 0.0
    %162 = vmatpush1.msra.mxu0 0.0
    %163 = vmatprep.subr.mxu0 0.0
    %164 = vmatpush1.msra.mxu0 0.0
    %165 = vmatprep.subr.mxu0 0.0
    %166 = vmatpush1.msra.mxu0 0.0
    %167 = vmatprep.subr.mxu0 0.0
    %168 = vmatpush1.msra.mxu0 0.0
    %169 = vmatprep.subr.mxu0 0.0
    %170 = vmatpush1.msra.mxu0 0.0
    %171 = vmatprep.subr.mxu0 0.0
    %172 = vmatpush1.msra.mxu0 0.0
    %173 = vmatprep.subr.mxu0 0.0
    %174 = vmatpush1.msra.mxu0 0.0
    %175 = vmatprep.subr.mxu0 0.0
    %176 = vmatpush1.msra.mxu0 0.0
    %177 = vmatprep.subr.mxu0 0.0
    %178 = vmatpush1.msra.mxu0 0.0
    %179 = vmatprep.subr.mxu0 0.0
    %180 = vmatpush1.msra.mxu0 0.0
    %181 = vmatprep.subr.mxu0 0.0
    %182 = vmatpush1.msra.mxu0 0.0
    %183 = vmatprep.subr.mxu0 0.0
    %184 = vmatpush1.msra.mxu0 0.0
    %185 = vmatprep.subr.mxu0 0.0
    %186 = vmatpush1.msra.mxu0 0.0
    %187 = vmatprep.subr.mxu0 0.0
    %188 = vmatpush1.msra.mxu0 0.0
    %189 = vmatprep.subr.mxu0 0.0
    %190 = vmatpush1.msra.mxu0 0.0
    %191 = vmatprep.subr.mxu0 0.0
    %192 = vmatpush1.msra.mxu0 0.0
    %193 = vmatprep.mubr.f32.mxu0 0.0
    %194 = vmatmul.mubr.f32.gmra.mrb[0].mxu0 %v105
    %v195 = vpop.f32.mrb[0].mxu0
    %v196 = vadd.f32 %v127, %v195
    %v197 = vpop.f32.mrb[0].mxu0
    %198 = vdwg.mxu0
    %v199 = vmax.f32 %v196, 0.0
    %200 = vst [vmem:[#allocation12] sm:$0xff] %v199
    %v201 = vld [vmem:[#allocation7] sm:$0xff]
    %v202 = vld [vmem:[#allocation7 + $0x8] sm:$0xff]
    %v203 = vld [vmem:[#allocation7 + $0x10] sm:$0xff]
    %v204 = vld [vmem:[#allocation7 + $0x18] sm:$0xff]
    %v205 = vld [vmem:[#allocation7 + $0x20] sm:$0xff]
    %v206 = vld [vmem:[#allocation7 + $0x28] sm:$0xff]
    %v207 = vld [vmem:[#allocation7 + $0x30] sm:$0xff]
    %v208 = vld [vmem:[#allocation7 + $0x38] sm:$0xff]
    %v209 = vld [vmem:[#allocation7 + $0x40] sm:$0xff]
    %v210 = vld [vmem:[#allocation7 + $0x48] sm:$0xff]
    %v211 = vld [vmem:[#allocation7 + $0x50] sm:$0xff]
    %v212 = vld [vmem:[#allocation7 + $0x58] sm:$0xff]
    %v213 = vld [vmem:[#allocation7 + $0x60] sm:$0xff]
    %v214 = vld [vmem:[#allocation7 + $0x68] sm:$0xff]
    %v215 = vld [vmem:[#allocation7 + $0x70] sm:$0xff]
    %v216 = vld [vmem:[#allocation7 + $0x78] sm:$0xff]
    %v217 = vld [vmem:[%s4] sm:$0x1]
    %v219 = vlaneseq
    %v220 = vshrl.u32 %v219, 7
    %v221 = vsub.s32 0, %v220
    %v222 = vrot.slane %v217, %v221
    %224 = vmatprep.subr.mxu0 0.0
    %225 = vmatpush1.msra.mxu0 %v201
    %226 = vmatprep.subr.mxu0 0.0
    %227 = vmatpush1.msra.mxu0 %v202
    %228 = vmatprep.subr.mxu0 0.0
    %229 = vmatpush1.msra.mxu0 %v203
    %230 = vmatprep.subr.mxu0 0.0
    %231 = vmatpush1.msra.mxu0 %v204
    %232 = vmatprep.subr.mxu0 0.0
    %233 = vmatpush1.msra.mxu0 %v205
    %234 = vmatprep.subr.mxu0 0.0
    %235 = vmatpush1.msra.mxu0 %v206
    %236 = vmatprep.subr.mxu0 0.0
    %237 = vmatpush1.msra.mxu0 %v207
    %238 = vmatprep.subr.mxu0 0.0
    %239 = vmatpush1.msra.mxu0 %v208
    %240 = vmatprep.subr.mxu0 0.0
    %241 = vmatpush1.msra.mxu0 %v209
    %242 = vmatprep.subr.mxu0 0.0
    %243 = vmatpush1.msra.mxu0 %v210
    %244 = vmatprep.subr.mxu0 0.0
    %245 = vmatpush1.msra.mxu0 %v211
    %246 = vmatprep.subr.mxu0 0.0
    %247 = vmatpush1.msra.mxu0 %v212
    %248 = vmatprep.subr.mxu0 0.0
    %249 = vmatpush1.msra.mxu0 %v213
    %250 = vmatprep.subr.mxu0 0.0
    %251 = vmatpush1.msra.mxu0 %v214
    %252 = vmatprep.subr.mxu0 0.0
    %253 = vmatpush1.msra.mxu0 %v215
    %254 = vmatprep.subr.mxu0 0.0
    %255 = vmatpush1.msra.mxu0 %v216
    %256 = vmatprep.subr.mxu0 0.0
    %257 = vmatpush1.msra.mxu0 0.0
    %258 = vmatprep.subr.mxu0 0.0
    %259 = vmatpush1.msra.mxu0 0.0
    %260 = vmatprep.subr.mxu0 0.0
    %261 = vmatpush1.msra.mxu0 0.0
    %262 = vmatprep.subr.mxu0 0.0
    %263 = vmatpush1.msra.mxu0 0.0
    %264 = vmatprep.subr.mxu0 0.0
    %265 = vmatpush1.msra.mxu0 0.0
    %266 = vmatprep.subr.mxu0 0.0
    %267 = vmatpush1.msra.mxu0 0.0
    %268 = vmatprep.subr.mxu0 0.0
    %269 = vmatpush1.msra.mxu0 0.0
    %270 = vmatprep.subr.mxu0 0.0
    %271 = vmatpush1.msra.mxu0 0.0
    %272 = vmatprep.subr.mxu0 0.0
    %273 = vmatpush1.msra.mxu0 0.0
    %274 = vmatprep.subr.mxu0 0.0
    %275 = vmatpush1.msra.mxu0 0.0
    %276 = vmatprep.subr.mxu0 0.0
    %277 = vmatpush1.msra.mxu0 0.0
    %278 = vmatprep.subr.mxu0 0.0
    %279 = vmatpush1.msra.mxu0 0.0
    %280 = vmatprep.subr.mxu0 0.0
    %281 = vmatpush1.msra.mxu0 0.0
    %282 = vmatprep.subr.mxu0 0.0
    %283 = vmatpush1.msra.mxu0 0.0
    %284 = vmatprep.subr.mxu0 0.0
    %285 = vmatpush1.msra.mxu0 0.0
    %286 = vmatprep.subr.mxu0 0.0
    %287 = vmatpush1.msra.mxu0 0.0
    %288 = vmatprep.mubr.f32.mxu0 0.0
    %289 = vmatmul.mubr.f32.gmra.mrb[0].mxu0 %v199
    %v290 = vpop.f32.mrb[0].mxu0
    %v291 = vadd.f32 %v222, %v290
    %v292 = vpop.f32.mrb[0].mxu0
    %293 = vdwg.mxu0
    %v294 = vmax.f32 %v291, 0.0
    %295 = vst [vmem:[#allocation14] sm:$0xff] %v294
    %v296 = vld [vmem:[#allocation8] sm:$0xff]
    %v297 = vld [vmem:[#allocation8 + $0x8] sm:$0xff]
    %v298 = vld [vmem:[#allocation8 + $0x10] sm:$0xff]
    %v299 = vld [vmem:[#allocation8 + $0x18] sm:$0xff]
    %v300 = vld [vmem:[#allocation8 + $0x20] sm:$0xff]
    %v301 = vld [vmem:[#allocation8 + $0x28] sm:$0xff]
    %v302 = vld [vmem:[#allocation8 + $0x30] sm:$0xff]
    %v303 = vld [vmem:[#allocation8 + $0x38] sm:$0xff]
    %v304 = vld [vmem:[#allocation8 + $0x40] sm:$0xff]
    %v305 = vld [vmem:[#allocation8 + $0x48] sm:$0xff]
    %v306 = vld [vmem:[#allocation8 + $0x50] sm:$0xff]
    %v307 = vld [vmem:[#allocation8 + $0x58] sm:$0xff]
    %v308 = vld [vmem:[#allocation8 + $0x60] sm:$0xff]
    %v309 = vld [vmem:[#allocation8 + $0x68] sm:$0xff]
    %v310 = vld [vmem:[#allocation8 + $0x70] sm:$0xff]
    %v311 = vld [vmem:[#allocation8 + $0x78] sm:$0xff]
    %v312 = vld [vmem:[%s6] sm:$0x1]
    %v314 = vlaneseq
    %v315 = vshrl.u32 %v314, 7
    %v316 = vsub.s32 0, %v315
    %v317 = vrot.slane %v312, %v316
    %319 = vmatprep.subr.mxu0 0.0
    %320 = vmatpush1.msra.mxu0 %v296
    %321 = vmatprep.subr.mxu0 0.0
    %322 = vmatpush1.msra.mxu0 %v297
    %323 = vmatprep.subr.mxu0 0.0
    %324 = vmatpush1.msra.mxu0 %v298
    %325 = vmatprep.subr.mxu0 0.0
    %326 = vmatpush1.msra.mxu0 %v299
    %327 = vmatprep.subr.mxu0 0.0
    %328 = vmatpush1.msra.mxu0 %v300
    %329 = vmatprep.subr.mxu0 0.0
    %330 = vmatpush1.msra.mxu0 %v301
    %331 = vmatprep.subr.mxu0 0.0
    %332 = vmatpush1.msra.mxu0 %v302
    %333 = vmatprep.subr.mxu0 0.0
    %334 = vmatpush1.msra.mxu0 %v303
    %335 = vmatprep.subr.mxu0 0.0
    %336 = vmatpush1.msra.mxu0 %v304
    %337 = vmatprep.subr.mxu0 0.0
    %338 = vmatpush1.msra.mxu0 %v305
    %339 = vmatprep.subr.mxu0 0.0
    %340 = vmatpush1.msra.mxu0 %v306
    %341 = vmatprep.subr.mxu0 0.0
    %342 = vmatpush1.msra.mxu0 %v307
    %343 = vmatprep.subr.mxu0 0.0
    %344 = vmatpush1.msra.mxu0 %v308
    %345 = vmatprep.subr.mxu0 0.0
    %346 = vmatpush1.msra.mxu0 %v309
    %347 = vmatprep.subr.mxu0 0.0
    %348 = vmatpush1.msra.mxu0 %v310
    %349 = vmatprep.subr.mxu0 0.0
    %350 = vmatpush1.msra.mxu0 %v311
    %351 = vmatprep.subr.mxu0 0.0
    %352 = vmatpush1.msra.mxu0 0.0
    %353 = vmatprep.subr.mxu0 0.0
    %354 = vmatpush1.msra.mxu0 0.0
    %355 = vmatprep.subr.mxu0 0.0
    %356 = vmatpush1.msra.mxu0 0.0
    %357 = vmatprep.subr.mxu0 0.0
    %358 = vmatpush1.msra.mxu0 0.0
    %359 = vmatprep.subr.mxu0 0.0
    %360 = vmatpush1.msra.mxu0 0.0
    %361 = vmatprep.subr.mxu0 0.0
    %362 = vmatpush1.msra.mxu0 0.0
    %363 = vmatprep.subr.mxu0 0.0
    %364 = vmatpush1.msra.mxu0 0.0
    %365 = vmatprep.subr.mxu0 0.0
    %366 = vmatpush1.msra.mxu0 0.0
    %367 = vmatprep.subr.mxu0 0.0
    %368 = vmatpush1.msra.mxu0 0.0
    %369 = vmatprep.subr.mxu0 0.0
    %370 = vmatpush1.msra.mxu0 0.0
    %371 = vmatprep.subr.mxu0 0.0
    %372 = vmatpush1.msra.mxu0 0.0
    %373 = vmatprep.subr.mxu0 0.0
    %374 = vmatpush1.msra.mxu0 0.0
    %375 = vmatprep.subr.mxu0 0.0
    %376 = vmatpush1.msra.mxu0 0.0
    %377 = vmatprep.subr.mxu0 0.0
    %378 = vmatpush1.msra.mxu0 0.0
    %379 = vmatprep.subr.mxu0 0.0
    %380 = vmatpush1.msra.mxu0 0.0
    %381 = vmatprep.subr.mxu0 0.0
    %382 = vmatpush1.msra.mxu0 0.0
    %383 = vmatprep.mubr.f32.mxu0 0.0
    %384 = vmatmul.mubr.f32.gmra.mrb[0].mxu0 %v294
    %v385 = vpop.f32.mrb[0].mxu0
    %v386 = vadd.f32 %v317, %v385
    %v387 = vpop.f32.mrb[0].mxu0
    %388 = vdwg.mxu0
    %v389 = vmax.f32 %v386, 0.0
    %390 = vst [vmem:[#allocation15] sm:$0xff] %v389
    %v391 = vld [vmem:[#allocation10] sm:$0xff]
    %v392 = vld [vmem:[#allocation10 + $0x8] sm:$0xff]
    %v393 = vld [vmem:[#allocation10 + $0x10] sm:$0xff]
    %v394 = vld [vmem:[#allocation10 + $0x18] sm:$0xff]
    %v395 = vld [vmem:[#allocation10 + $0x20] sm:$0xff]
    %v396 = vld [vmem:[#allocation10 + $0x28] sm:$0xff]
    %v397 = vld [vmem:[#allocation10 + $0x30] sm:$0xff]
    %v398 = vld [vmem:[#allocation10 + $0x38] sm:$0xff]
    %v399 = vld [vmem:[#allocation10 + $0x40] sm:$0xff]
    %v400 = vld [vmem:[#allocation10 + $0x48] sm:$0xff]
    %v401 = vld [vmem:[#allocation10 + $0x50] sm:$0xff]
    %v402 = vld [vmem:[#allocation10 + $0x58] sm:$0xff]
    %v403 = vld [vmem:[#allocation10 + $0x60] sm:$0xff]
    %v404 = vld [vmem:[#allocation10 + $0x68] sm:$0xff]
    %v405 = vld [vmem:[#allocation10 + $0x70] sm:$0xff]
    %v406 = vld [vmem:[#allocation10 + $0x78] sm:$0xff]
    %v407 = vld [vmem:[%s8] sm:$0x1]
    %v409 = vlaneseq
    %v410 = vshrl.u32 %v409, 7
    %v411 = vsub.s32 0, %v410
    %v412 = vrot.slane %v407, %v411
    %414 = vmatprep.subr.mxu0 0.0
    %415 = vmatpush1.msra.mxu0 %v391
    %416 = vmatprep.subr.mxu0 0.0
    %417 = vmatpush1.msra.mxu0 %v392
    %418 = vmatprep.subr.mxu0 0.0
    %419 = vmatpush1.msra.mxu0 %v393
    %420 = vmatprep.subr.mxu0 0.0
    %421 = vmatpush1.msra.mxu0 %v394
    %422 = vmatprep.subr.mxu0 0.0
    %423 = vmatpush1.msra.mxu0 %v395
    %424 = vmatprep.subr.mxu0 0.0
    %425 = vmatpush1.msra.mxu0 %v396
    %426 = vmatprep.subr.mxu0 0.0
    %427 = vmatpush1.msra.mxu0 %v397
    %428 = vmatprep.subr.mxu0 0.0
    %429 = vmatpush1.msra.mxu0 %v398
    %430 = vmatprep.subr.mxu0 0.0
    %431 = vmatpush1.msra.mxu0 %v399
    %432 = vmatprep.subr.mxu0 0.0
    %433 = vmatpush1.msra.mxu0 %v400
    %434 = vmatprep.subr.mxu0 0.0
    %435 = vmatpush1.msra.mxu0 %v401
    %436 = vmatprep.subr.mxu0 0.0
    %437 = vmatpush1.msra.mxu0 %v402
    %438 = vmatprep.subr.mxu0 0.0
    %439 = vmatpush1.msra.mxu0 %v403
    %440 = vmatprep.subr.mxu0 0.0
    %441 = vmatpush1.msra.mxu0 %v404
    %442 = vmatprep.subr.mxu0 0.0
    %443 = vmatpush1.msra.mxu0 %v405
    %444 = vmatprep.subr.mxu0 0.0
    %445 = vmatpush1.msra.mxu0 %v406
    %446 = vmatprep.subr.mxu0 0.0
    %447 = vmatpush1.msra.mxu0 0.0
    %448 = vmatprep.subr.mxu0 0.0
    %449 = vmatpush1.msra.mxu0 0.0
    %450 = vmatprep.subr.mxu0 0.0
    %451 = vmatpush1.msra.mxu0 0.0
    %452 = vmatprep.subr.mxu0 0.0
    %453 = vmatpush1.msra.mxu0 0.0
    %454 = vmatprep.subr.mxu0 0.0
    %455 = vmatpush1.msra.mxu0 0.0
    %456 = vmatprep.subr.mxu0 0.0
    %457 = vmatpush1.msra.mxu0 0.0
    %458 = vmatprep.subr.mxu0 0.0
    %459 = vmatpush1.msra.mxu0 0.0
    %460 = vmatprep.subr.mxu0 0.0
    %461 = vmatpush1.msra.mxu0 0.0
    %462 = vmatprep.subr.mxu0 0.0
    %463 = vmatpush1.msra.mxu0 0.0
    %464 = vmatprep.subr.mxu0 0.0
    %465 = vmatpush1.msra.mxu0 0.0
    %466 = vmatprep.subr.mxu0 0.0
    %467 = vmatpush1.msra.mxu0 0.0
    %468 = vmatprep.subr.mxu0 0.0
    %469 = vmatpush1.msra.mxu0 0.0
    %470 = vmatprep.subr.mxu0 0.0
    %471 = vmatpush1.msra.mxu0 0.0
    %472 = vmatprep.subr.mxu0 0.0
    %473 = vmatpush1.msra.mxu0 0.0
    %474 = vmatprep.subr.mxu0 0.0
    %475 = vmatpush1.msra.mxu0 0.0
    %476 = vmatprep.subr.mxu0 0.0
    %477 = vmatpush1.msra.mxu0 0.0
    %478 = vmatprep.mubr.f32.mxu0 0.0
    %479 = vmatmul.mubr.f32.gmra.mrb[0].mxu0 %v389
    %v480 = vpop.f32.mrb[0].mxu0
    %v481 = vadd.f32 %v412, %v480
    %v482 = vpop.f32.mrb[0].mxu0
    %483 = vdwg.mxu0
    %484 = vst [vmem:[#allocation11] sm:$0xff] %v481
    // Predicated region
    $region58: #{tpu_custom_call.1} parent=1 // pred_check
      _
    $region59: #{tpu_custom_call.1} parent=1 // pred_check_branch
      %486 = sbr.rel (0) target = $region61
    $region60: #{tpu_custom_call.1} parent=1 // pred_region
      %s488 = ssub.s32 128, 128
      %489 = vsyncadd [#allocation4], %s488
      %s491 = sshll.u32 [#allocation11], 4
      %s492 = int_to_ptr.vmem [resolvable:$true] %s491
      %494 = dma.vmem_to_hbm [thread:$0]  %s492, 128, %s9, [#allocation4]
    $region61: #{tpu_custom_call.1} parent=1 // pred_fallthru
      _
    // Predicated region
    $region62: #{tpu_custom_call.1} parent=1 // pred_check
      _
    $region63: #{tpu_custom_call.1} parent=1 // pred_check_branch
      %496 = sbr.rel (0) target = $region65
    $region64: #{tpu_custom_call.1} parent=1 // pred_region
      %s498 = ssub.s32 128, 128
      %499 = vsyncadd [#allocation13], %s498
      %s501 = sshll.u32 [#allocation12], 4
      %s502 = int_to_ptr.vmem [resolvable:$true] %s501
      %504 = dma.vmem_to_hbm [thread:$0]  %s502, 128, %s10, [#allocation13]
    $region65: #{tpu_custom_call.1} parent=1 // pred_fallthru
      _
    // Predicated region
    $region66: #{tpu_custom_call.1} parent=1 // pred_check
      _
    $region67: #{tpu_custom_call.1} parent=1 // pred_check_branch
      %506 = sbr.rel (0) target = $region69
    $region68: #{tpu_custom_call.1} parent=1 // pred_region
      %s508 = ssub.s32 128, 128
      %509 = vsyncadd [#allocation13], %s508
      %s511 = sshll.u32 [#allocation14], 4
      %s512 = int_to_ptr.vmem [resolvable:$true] %s511
      %514 = dma.vmem_to_hbm [thread:$0]  %s512, 128, %s11, [#allocation13]
    $region69: #{tpu_custom_call.1} parent=1 // pred_fallthru
      _
    // Predicated region
    $region70: #{tpu_custom_call.1} parent=1 // pred_check
      _
    $region71: #{tpu_custom_call.1} parent=1 // pred_check_branch
      %516 = sbr.rel (0) target = $region73
    $region72: #{tpu_custom_call.1} parent=1 // pred_region
      %s518 = ssub.s32 128, 128
      %519 = vsyncadd [#allocation16], %s518
      %s521 = sshll.u32 [#allocation15], 4
      %s522 = int_to_ptr.vmem [resolvable:$true] %s521
      %524 = dma.vmem_to_hbm [thread:$0]  %s522, 128, %s12, [#allocation16]
    $region73: #{tpu_custom_call.1} parent=1 // pred_fallthru
      _
    // Predicated region
    $region74: #{tpu_custom_call.1} parent=1 // pred_check
      _
    $region75: #{tpu_custom_call.1} parent=1 // pred_check_branch
      %526 = sbr.rel (0) target = $region77
    $region76: #{tpu_custom_call.1} parent=1 // pred_region
      %527 = dma.done [#allocation4], 128
    $region77: #{tpu_custom_call.1} parent=1 // pred_fallthru
      _
    // Predicated region
    $region78: #{tpu_custom_call.1} parent=1 // pred_check
      _
    $region79: #{tpu_custom_call.1} parent=1 // pred_check_branch
      %529 = sbr.rel (0) target = $region81
    $region80: #{tpu_custom_call.1} parent=1 // pred_region
      %530 = dma.done [#allocation13], 128
    $region81: #{tpu_custom_call.1} parent=1 // pred_fallthru
      _
    // Predicated region
    $region82: #{tpu_custom_call.1} parent=1 // pred_check
      _
    $region83: #{tpu_custom_call.1} parent=1 // pred_check_branch
      %532 = sbr.rel (0) target = $region85
    $region84: #{tpu_custom_call.1} parent=1 // pred_region
      %533 = dma.done [#allocation13], 128
    $region85: #{tpu_custom_call.1} parent=1 // pred_fallthru
      _
    // Predicated region
    $region86: #{tpu_custom_call.1} parent=1 // pred_check
      _
    $region87: #{tpu_custom_call.1} parent=1 // pred_check_branch
      %535 = sbr.rel (0) target = $region89
    $region88: #{tpu_custom_call.1} parent=1 // pred_region
      %536 = dma.done [#allocation16], 128
    $region89: #{tpu_custom_call.1} parent=1 // pred_fallthru
      _
    %537 = vsyncpa [#allocation3], 1
    %538 = vsyncpa [#allocation6], 1
    %539 = vsyncpa [#allocation9], 1
    %540 = vsyncpa [#allocation4], 1
    %541 = vsyncpa [#allocation13], 1
    %542 = vsyncpa [#allocation16], 1

// kernel: tpu_custom_call.1
$region0: #{tpu_custom_call.1}
  #allocation0 [shape = 'u32[]', space=smem, size = 0x4, offset = 0x4, fixed_abs, tag = 'smem constant byte address 0x4 - core index']
  #allocation1 [shape = 'u32[144,128]{1,0:T(1,128)}', space=vmem, size = 0x12000, scoped, tag = 'internal scratch']
  %s0 = inlined_call_operand.hbm [shape: f32[8,128], index: 0, kind: input, shape index: {}]
  %s1 = inlined_call_operand.hbm [shape: f32[128,128], index: 1, kind: input, shape index: {}]
  %s2 = inlined_call_operand.vmem [shape: f32[1,128], index: 2, kind: input, shape index: {}]
  %s3 = inlined_call_operand.hbm [shape: f32[128,128], index: 3, kind: input, shape index: {}]
  %s4 = inlined_call_operand.vmem [shape: f32[1,128], index: 4, kind: input, shape index: {}]
  %s5 = inlined_call_operand.hbm [shape: f32[128,128], index: 5, kind: input, shape index: {}]
  %s6 = inlined_call_operand.vmem [shape: f32[1,128], index: 6, kind: input, shape index: {}]
  %s7 = inlined_call_operand.hbm [shape: f32[128,128], index: 7, kind: input, shape index: {}]
  %s8 = inlined_call_operand.vmem [shape: f32[1,128], index: 8, kind: input, shape index: {}]
  %s9 = inlined_call_operand.hbm [shape: f32[8,128], index: 9, kind: output, shape index: {0}]
  %s10 = inlined_call_operand.hbm [shape: f32[8,128], index: 10, kind: output, shape index: {1}]
  %s11 = inlined_call_operand.hbm [shape: f32[8,128], index: 11, kind: output, shape index: {2}]
  %s12 = inlined_call_operand.hbm [shape: f32[8,128], index: 12, kind: output, shape index: {3}]
  %13 = xla_tuple %s9, %s10, %s11, %s12
  %s14 = sld [smem:[#allocation0]]
  $region90: #{tpu_custom_call.1} parent=0
    _
  %s16 = ssub.s32 1, %s14
  %s17 = scalar_select 0, %s16, %s14
  $region1: #{tpu_custom_call.1} parent=0
    #allocation2 [shape = 'u8[4096]{0}', space=vmem, size = 0x1000, scoped, tag = 'input window, operand 0, single buffered']
    #allocation3 [shape = 's32[1]{0}', space=sflag, size = 0x4, scoped, tag = 'scoped memory for tpu_custom_call.1']
    #allocation4 [shape = 's32[1]{0}', space=sflag, size = 0x4, scoped, tag = 'scoped memory for tpu_custom_call.1']
    #allocation5 [shape = 'u8[65536]{0}', space=vmem, size = 0x10000, scoped, tag = 'input window, operand 1, single buffered']
    #allocation6 [shape = 's32[1]{0}', space=sflag, size = 0x4, scoped, tag = 'scoped memory for tpu_custom_call.1']
    #allocation7 [shape = 'u8[65536]{0}', space=vmem, size = 0x10000, scoped, tag = 'input window, operand 3, single buffered']
    #allocation8 [shape = 'u8[65536]{0}', space=vmem, size = 0x10000, scoped, tag = 'input window, operand 5, single buffered']
    #allocation9 [shape = 's32[1]{0}', space=sflag, size = 0x4, scoped, tag = 'scoped memory for tpu_custom_call.1']
    #allocation10 [shape = 'u8[65536]{0}', space=vmem, size = 0x10000, scoped, tag = 'input window, operand 7, single buffered']
    #allocation11 [shape = 'u8[4096]{0}', space=vmem, size = 0x1000, scoped, tag = 'output window, operand 0, single buffered']
    #allocation12 [shape = 'u8[4096]{0}', space=vmem, size = 0x1000, scoped, tag = 'output window, operand 1, single buffered']
    #allocation13 [shape = 's32[1]{0}', space=sflag, size = 0x4, scoped, tag = 'scoped memory for tpu_custom_call.1']
    #allocation14 [shape = 'u8[4096]{0}', space=vmem, size = 0x1000, scoped, tag = 'output window, operand 2, single buffered']
    #allocation15 [shape = 'u8[4096]{0}', space=vmem, size = 0x1000, scoped, tag = 'output window, operand 3, single buffered']
    #allocation16 [shape = 's32[1]{0}', space=sflag, size = 0x4, scoped, tag = 'scoped memory for tpu_custom_call.1']
    %18 = vsyncpa [#allocation3], 0
    %19 = vsyncpa [#allocation6], 0
    %20 = vsyncpa [#allocation9], 0
    %21 = vsyncpa [#allocation4], 0
    %22 = vsyncpa [#allocation13], 0
    %23 = vsyncpa [#allocation16], 0
    // Predicated region
    $region2: #{tpu_custom_call.1} parent=1 // pred_check
      _
    $region3: #{tpu_custom_call.1} parent=1 // pred_check_branch
      %25 = sbr.rel (0) target = $region5
    $region4: #{tpu_custom_call.1} parent=1 // pred_region
      %s27 = ssub.s32 128, 128
      %28 = vsyncadd [#allocation3], %s27
      %s30 = sshll.u32 [#allocation2], 4
      %s31 = int_to_ptr.vmem [resolvable:$true] %s30
      %33 = dma.hbm_to_vmem [thread:$0]  %s0, 128, %s31, [#allocation3]
    $region5: #{tpu_custom_call.1} parent=1 // pred_fallthru
      _
    // Predicated region
    $region6: #{tpu_custom_call.1} parent=1 // pred_check
      _
    $region7: #{tpu_custom_call.1} parent=1 // pred_check_branch
      %35 = sbr.rel (0) target = $region9
    $region8: #{tpu_custom_call.1} parent=1 // pred_region
      %s37 = ssub.s32 2048, 2048
      %38 = vsyncadd [#allocation6], %s37
      %s39 = sshll.u32 [#allocation5], 4
      %s40 = int_to_ptr.vmem [resolvable:$true] %s39
      %45 = dma.hbm_to_vmem [thread:$0]  %s1, 2048, %s40, [#allocation6], 128, 128, 8
    $region9: #{tpu_custom_call.1} parent=1 // pred_fallthru
      _
    // Predicated region
    $region10: #{tpu_custom_call.1} parent=1 // pred_check
      _
    $region11: #{tpu_custom_call.1} parent=1 // pred_check_branch
      %47 = sbr.rel (0) target = $region13
    $region12: #{tpu_custom_call.1} parent=1 // pred_region
      _
    $region13: #{tpu_custom_call.1} parent=1 // pred_fallthru
      _
    // Predicated region
    $region14: #{tpu_custom_call.1} parent=1 // pred_check
      _
    $region15: #{tpu_custom_call.1} parent=1 // pred_check_branch
      %49 = sbr.rel (0) target = $region17
    $region16: #{tpu_custom_call.1} parent=1 // pred_region
      %s51 = ssub.s32 2048, 2048
      %52 = vsyncadd [#allocation6], %s51
      %s53 = sshll.u32 [#allocation7], 4
      %s54 = int_to_ptr.vmem [resolvable:$true] %s53
      %59 = dma.hbm_to_vmem [thread:$0]  %s3, 2048, %s54, [#allocation6], 128, 128, 8
    $region17: #{tpu_custom_call.1} parent=1 // pred_fallthru
      _
    // Predicated region
    $region18: #{tpu_custom_call.1} parent=1 // pred_check
      _
    $region19: #{tpu_custom_call.1} parent=1 // pred_check_branch
      %61 = sbr.rel (0) target = $region21
    $region20: #{tpu_custom_call.1} parent=1 // pred_region
      _
    $region21: #{tpu_custom_call.1} parent=1 // pred_fallthru
      _
    // Predicated region
    $region22: #{tpu_custom_call.1} parent=1 // pred_check
      _
    $region23: #{tpu_custom_call.1} parent=1 // pred_check_branch
      %63 = sbr.rel (0) target = $region25
    $region24: #{tpu_custom_call.1} parent=1 // pred_region
      %s65 = ssub.s32 2048, 2048
      %66 = vsyncadd [#allocation9], %s65
      %s67 = sshll.u32 [#allocation8], 4
      %s68 = int_to_ptr.vmem [resolvable:$true] %s67
      %73 = dma.hbm_to_vmem [thread:$0]  %s5, 2048, %s68, [#allocation9], 128, 128, 8
    $region25: #{tpu_custom_call.1} parent=1 // pred_fallthru
      _
    // Predicated region
    $region26: #{tpu_custom_call.1} parent=1 // pred_check
      _
    $region27: #{tpu_custom_call.1} parent=1 // pred_check_branch
      %75 = sbr.rel (0) target = $region29
    $region28: #{tpu_custom_call.1} parent=1 // pred_region
      _
    $region29: #{tpu_custom_call.1} parent=1 // pred_fallthru
      _
    // Predicated region
    $region30: #{tpu_custom_call.1} parent=1 // pred_check
      _
    $region31: #{tpu_custom_call.1} parent=1 // pred_check_branch
      %77 = sbr.rel (0) target = $region33
    $region32: #{tpu_custom_call.1} parent=1 // pred_region
      %s79 = ssub.s32 2048, 2048
      %80 = vsyncadd [#allocation9], %s79
      %s81 = sshll.u32 [#allocation10], 4
      %s82 = int_to_ptr.vmem [resolvable:$true] %s81
      %87 = dma.hbm_to_vmem [thread:$0]  %s7, 2048, %s82, [#allocation9], 128, 128, 8
    $region33: #{tpu_custom_call.1} parent=1 // pred_fallthru
      _
    // Predicated region
    $region34: #{tpu_custom_call.1} parent=1 // pred_check
      _
    $region35: #{tpu_custom_call.1} parent=1 // pred_check_branch
      %89 = sbr.rel (0) target = $region37
    $region36: #{tpu_custom_call.1} parent=1 // pred_region
      _
    $region37: #{tpu_custom_call.1} parent=1 // pred_fallthru
      _
    // Predicated region
    $region38: #{tpu_custom_call.1} parent=1 // pred_check
      _
    $region39: #{tpu_custom_call.1} parent=1 // pred_check_branch
      %91 = sbr.rel (0) target = $region41
    $region40: #{tpu_custom_call.1} parent=1 // pred_region
      %92 = dma.done [#allocation3], 128
    $region41: #{tpu_custom_call.1} parent=1 // pred_fallthru
      _
    // Predicated region
    $region42: #{tpu_custom_call.1} parent=1 // pred_check
      _
    $region43: #{tpu_custom_call.1} parent=1 // pred_check_branch
      %94 = sbr.rel (0) target = $region45
    $region44: #{tpu_custom_call.1} parent=1 // pred_region
      %95 = dma.done [#allocation6], 2048
    $region45: #{tpu_custom_call.1} parent=1 // pred_fallthru
      _
    // Predicated region
    $region46: #{tpu_custom_call.1} parent=1 // pred_check
      _
    $region47: #{tpu_custom_call.1} parent=1 // pred_check_branch
      %97 = sbr.rel (0) target = $region49
    $region48: #{tpu_custom_call.1} parent=1 // pred_region
      %98 = dma.done [#allocation6], 2048
    $region49: #{tpu_custom_call.1} parent=1 // pred_fallthru
      _
    // Predicated region
    $region50: #{tpu_custom_call.1} parent=1 // pred_check
      _
    $region51: #{tpu_custom_call.1} parent=1 // pred_check_branch
      %100 = sbr.rel (0) target = $region53
    $region52: #{tpu_custom_call.1} parent=1 // pred_region
      %101 = dma.done [#allocation9], 2048
    $region53: #{tpu_custom_call.1} parent=1 // pred_fallthru
      _
    // Predicated region
    $region54: #{tpu_custom_call.1} parent=1 // pred_check
      _
    $region55: #{tpu_custom_call.1} parent=1 // pred_check_branch
      %103 = sbr.rel (0) target = $region57
    $region56: #{tpu_custom_call.1} parent=1 // pred_region
      %104 = dma.done [#allocation9], 2048
    $region57: #{tpu_custom_call.1} parent=1 // pred_fallthru
      _
    %v105 = vld [vmem:[#allocation2] sm:$0xff]
    %v106 = vld [vmem:[#allocation5] sm:$0xff]
    %v107 = vld [vmem:[#allocation5 + $0x8] sm:$0xff]
    %v108 = vld [vmem:[#allocation5 + $0x10] sm:$0xff]
    %v109 = vld [vmem:[#allocation5 + $0x18] sm:$0xff]
    %v110 = vld [vmem:[#allocation5 + $0x20] sm:$0xff]
    %v111 = vld [vmem:[#allocation5 + $0x28] sm:$0xff]
    %v112 = vld [vmem:[#allocation5 + $0x30] sm:$0xff]
    %v113 = vld [vmem:[#allocation5 + $0x38] sm:$0xff]
    %v114 = vld [vmem:[#allocation5 + $0x40] sm:$0xff]
    %v115 = vld [vmem:[#allocation5 + $0x48] sm:$0xff]
    %v116 = vld [vmem:[#allocation5 + $0x50] sm:$0xff]
    %v117 = vld [vmem:[#allocation5 + $0x58] sm:$0xff]
    %v118 = vld [vmem:[#allocation5 + $0x60] sm:$0xff]
    %v119 = vld [vmem:[#allocation5 + $0x68] sm:$0xff]
    %v120 = vld [vmem:[#allocation5 + $0x70] sm:$0xff]
    %v121 = vld [vmem:[#allocation5 + $0x78] sm:$0xff]
    %v122 = vld [vmem:[%s2] sm:$0x1]
    %v124 = vlaneseq
    %v125 = vshrl.u32 %v124, 7
    %v126 = vsub.s32 0, %v125
    %v127 = vrot.slane %v122, %v126
    %129 = vmatprep.subr.mxu0 0.0
    %130 = vmatpush1.msra.mxu0 %v106
    %131 = vmatprep.subr.mxu0 0.0
    %132 = vmatpush1.msra.mxu0 %v107
    %133 = vmatprep.subr.mxu0 0.0
    %134 = vmatpush1.msra.mxu0 %v108
    %135 = vmatprep.subr.mxu0 0.0
    %136 = vmatpush1.msra.mxu0 %v109
    %137 = vmatprep.subr.mxu0 0.0
    %138 = vmatpush1.msra.mxu0 %v110
    %139 = vmatprep.subr.mxu0 0.0
    %140 = vmatpush1.msra.mxu0 %v111
    %141 = vmatprep.subr.mxu0 0.0
    %142 = vmatpush1.msra.mxu0 %v112
    %143 = vmatprep.subr.mxu0 0.0
    %144 = vmatpush1.msra.mxu0 %v113
    %145 = vmatprep.subr.mxu0 0.0
    %146 = vmatpush1.msra.mxu0 %v114
    %147 = vmatprep.subr.mxu0 0.0
    %148 = vmatpush1.msra.mxu0 %v115
    %149 = vmatprep.subr.mxu0 0.0
    %150 = vmatpush1.msra.mxu0 %v116
    %151 = vmatprep.subr.mxu0 0.0
    %152 = vmatpush1.msra.mxu0 %v117
    %153 = vmatprep.subr.mxu0 0.0
    %154 = vmatpush1.msra.mxu0 %v118
    %155 = vmatprep.subr.mxu0 0.0
    %156 = vmatpush1.msra.mxu0 %v119
    %157 = vmatprep.subr.mxu0 0.0
    %158 = vmatpush1.msra.mxu0 %v120
    %159 = vmatprep.subr.mxu0 0.0
    %160 = vmatpush1.msra.mxu0 %v121
    %161 = vmatprep.subr.mxu0 0.0
    %162 = vmatpush1.msra.mxu0 0.0
    %163 = vmatprep.subr.mxu0 0.0
    %164 = vmatpush1.msra.mxu0 0.0
    %165 = vmatprep.subr.mxu0 0.0
    %166 = vmatpush1.msra.mxu0 0.0
    %167 = vmatprep.subr.mxu0 0.0
    %168 = vmatpush1.msra.mxu0 0.0
    %169 = vmatprep.subr.mxu0 0.0
    %170 = vmatpush1.msra.mxu0 0.0
    %171 = vmatprep.subr.mxu0 0.0
    %172 = vmatpush1.msra.mxu0 0.0
    %173 = vmatprep.subr.mxu0 0.0
    %174 = vmatpush1.msra.mxu0 0.0
    %175 = vmatprep.subr.mxu0 0.0
    %176 = vmatpush1.msra.mxu0 0.0
    %177 = vmatprep.subr.mxu0 0.0
    %178 = vmatpush1.msra.mxu0 0.0
    %179 = vmatprep.subr.mxu0 0.0
    %180 = vmatpush1.msra.mxu0 0.0
    %181 = vmatprep.subr.mxu0 0.0
    %182 = vmatpush1.msra.mxu0 0.0
    %183 = vmatprep.subr.mxu0 0.0
    %184 = vmatpush1.msra.mxu0 0.0
    %185 = vmatprep.subr.mxu0 0.0
    %186 = vmatpush1.msra.mxu0 0.0
    %187 = vmatprep.subr.mxu0 0.0
    %188 = vmatpush1.msra.mxu0 0.0
    %189 = vmatprep.subr.mxu0 0.0
    %190 = vmatpush1.msra.mxu0 0.0
    %191 = vmatprep.subr.mxu0 0.0
    %192 = vmatpush1.msra.mxu0 0.0
    %193 = vmatprep.mubr.f32.mxu0 0.0
    %194 = vmatmul.mubr.f32.gmra.mrb[0].mxu0 %v105
    %v195 = vpop.f32.mrb[0].mxu0
    %v196 = vadd.f32 %v127, %v195
    %v197 = vpop.f32.mrb[0].mxu0
    %198 = vdwg.mxu0
    %v199 = vmax.f32 %v196, 0.0
    %200 = vst [vmem:[#allocation12] sm:$0xff] %v199
    %v201 = vld [vmem:[#allocation7] sm:$0xff]
    %v202 = vld [vmem:[#allocation7 + $0x8] sm:$0xff]
    %v203 = vld [vmem:[#allocation7 + $0x10] sm:$0xff]
    %v204 = vld [vmem:[#allocation7 + $0x18] sm:$0xff]
    %v205 = vld [vmem:[#allocation7 + $0x20] sm:$0xff]
    %v206 = vld [vmem:[#allocation7 + $0x28] sm:$0xff]
    %v207 = vld [vmem:[#allocation7 + $0x30] sm:$0xff]
    %v208 = vld [vmem:[#allocation7 + $0x38] sm:$0xff]
    %v209 = vld [vmem:[#allocation7 + $0x40] sm:$0xff]
    %v210 = vld [vmem:[#allocation7 + $0x48] sm:$0xff]
    %v211 = vld [vmem:[#allocation7 + $0x50] sm:$0xff]
    %v212 = vld [vmem:[#allocation7 + $0x58] sm:$0xff]
    %v213 = vld [vmem:[#allocation7 + $0x60] sm:$0xff]
    %v214 = vld [vmem:[#allocation7 + $0x68] sm:$0xff]
    %v215 = vld [vmem:[#allocation7 + $0x70] sm:$0xff]
    %v216 = vld [vmem:[#allocation7 + $0x78] sm:$0xff]
    %v217 = vld [vmem:[%s4] sm:$0x1]
    %v219 = vlaneseq
    %v220 = vshrl.u32 %v219, 7
    %v221 = vsub.s32 0, %v220
    %v222 = vrot.slane %v217, %v221
    %224 = vmatprep.subr.mxu0 0.0
    %225 = vmatpush1.msra.mxu0 %v201
    %226 = vmatprep.subr.mxu0 0.0
    %227 = vmatpush1.msra.mxu0 %v202
    %228 = vmatprep.subr.mxu0 0.0
    %229 = vmatpush1.msra.mxu0 %v203
    %230 = vmatprep.subr.mxu0 0.0
    %231 = vmatpush1.msra.mxu0 %v204
    %232 = vmatprep.subr.mxu0 0.0
    %233 = vmatpush1.msra.mxu0 %v205
    %234 = vmatprep.subr.mxu0 0.0
    %235 = vmatpush1.msra.mxu0 %v206
    %236 = vmatprep.subr.mxu0 0.0
    %237 = vmatpush1.msra.mxu0 %v207
    %238 = vmatprep.subr.mxu0 0.0
    %239 = vmatpush1.msra.mxu0 %v208
    %240 = vmatprep.subr.mxu0 0.0
    %241 = vmatpush1.msra.mxu0 %v209
    %242 = vmatprep.subr.mxu0 0.0
    %243 = vmatpush1.msra.mxu0 %v210
    %244 = vmatprep.subr.mxu0 0.0
    %245 = vmatpush1.msra.mxu0 %v211
    %246 = vmatprep.subr.mxu0 0.0
    %247 = vmatpush1.msra.mxu0 %v212
    %248 = vmatprep.subr.mxu0 0.0
    %249 = vmatpush1.msra.mxu0 %v213
    %250 = vmatprep.subr.mxu0 0.0
    %251 = vmatpush1.msra.mxu0 %v214
    %252 = vmatprep.subr.mxu0 0.0
    %253 = vmatpush1.msra.mxu0 %v215
    %254 = vmatprep.subr.mxu0 0.0
    %255 = vmatpush1.msra.mxu0 %v216
    %256 = vmatprep.subr.mxu0 0.0
    %257 = vmatpush1.msra.mxu0 0.0
    %258 = vmatprep.subr.mxu0 0.0
    %259 = vmatpush1.msra.mxu0 0.0
    %260 = vmatprep.subr.mxu0 0.0
    %261 = vmatpush1.msra.mxu0 0.0
    %262 = vmatprep.subr.mxu0 0.0
    %263 = vmatpush1.msra.mxu0 0.0
    %264 = vmatprep.subr.mxu0 0.0
    %265 = vmatpush1.msra.mxu0 0.0
    %266 = vmatprep.subr.mxu0 0.0
    %267 = vmatpush1.msra.mxu0 0.0
    %268 = vmatprep.subr.mxu0 0.0
    %269 = vmatpush1.msra.mxu0 0.0
    %270 = vmatprep.subr.mxu0 0.0
    %271 = vmatpush1.msra.mxu0 0.0
    %272 = vmatprep.subr.mxu0 0.0
    %273 = vmatpush1.msra.mxu0 0.0
    %274 = vmatprep.subr.mxu0 0.0
    %275 = vmatpush1.msra.mxu0 0.0
    %276 = vmatprep.subr.mxu0 0.0
    %277 = vmatpush1.msra.mxu0 0.0
    %278 = vmatprep.subr.mxu0 0.0
    %279 = vmatpush1.msra.mxu0 0.0
    %280 = vmatprep.subr.mxu0 0.0
    %281 = vmatpush1.msra.mxu0 0.0
    %282 = vmatprep.subr.mxu0 0.0
    %283 = vmatpush1.msra.mxu0 0.0
    %284 = vmatprep.subr.mxu0 0.0
    %285 = vmatpush1.msra.mxu0 0.0
    %286 = vmatprep.subr.mxu0 0.0
    %287 = vmatpush1.msra.mxu0 0.0
    %288 = vmatprep.mubr.f32.mxu0 0.0
    %289 = vmatmul.mubr.f32.gmra.mrb[0].mxu0 %v199
    %v290 = vpop.f32.mrb[0].mxu0
    %v291 = vadd.f32 %v222, %v290
    %v292 = vpop.f32.mrb[0].mxu0
    %293 = vdwg.mxu0
    %v294 = vmax.f32 %v291, 0.0
    %295 = vst [vmem:[#allocation14] sm:$0xff] %v294
    %v296 = vld [vmem:[#allocation8] sm:$0xff]
    %v297 = vld [vmem:[#allocation8 + $0x8] sm:$0xff]
    %v298 = vld [vmem:[#allocation8 + $0x10] sm:$0xff]
    %v299 = vld [vmem:[#allocation8 + $0x18] sm:$0xff]
    %v300 = vld [vmem:[#allocation8 + $0x20] sm:$0xff]
    %v301 = vld [vmem:[#allocation8 + $0x28] sm:$0xff]
    %v302 = vld [vmem:[#allocation8 + $0x30] sm:$0xff]
    %v303 = vld [vmem:[#allocation8 + $0x38] sm:$0xff]
    %v304 = vld [vmem:[#allocation8 + $0x40] sm:$0xff]
    %v305 = vld [vmem:[#allocation8 + $0x48] sm:$0xff]
    %v306 = vld [vmem:[#allocation8 + $0x50] sm:$0xff]
    %v307 = vld [vmem:[#allocation8 + $0x58] sm:$0xff]
    %v308 = vld [vmem:[#allocation8 + $0x60] sm:$0xff]
    %v309 = vld [vmem:[#allocation8 + $0x68] sm:$0xff]
    %v310 = vld [vmem:[#allocation8 + $0x70] sm:$0xff]
    %v311 = vld [vmem:[#allocation8 + $0x78] sm:$0xff]
    %v312 = vld [vmem:[%s6] sm:$0x1]
    %v314 = vlaneseq
    %v315 = vshrl.u32 %v314, 7
    %v316 = vsub.s32 0, %v315
    %v317 = vrot.slane %v312, %v316
    %319 = vmatprep.subr.mxu0 0.0
    %320 = vmatpush1.msra.mxu0 %v296
    %321 = vmatprep.subr.mxu0 0.0
    %322 = vmatpush1.msra.mxu0 %v297
    %323 = vmatprep.subr.mxu0 0.0
    %324 = vmatpush1.msra.mxu0 %v298
    %325 = vmatprep.subr.mxu0 0.0
    %326 = vmatpush1.msra.mxu0 %v299
    %327 = vmatprep.subr.mxu0 0.0
    %328 = vmatpush1.msra.mxu0 %v300
    %329 = vmatprep.subr.mxu0 0.0
    %330 = vmatpush1.msra.mxu0 %v301
    %331 = vmatprep.subr.mxu0 0.0
    %332 = vmatpush1.msra.mxu0 %v302
    %333 = vmatprep.subr.mxu0 0.0
    %334 = vmatpush1.msra.mxu0 %v303
    %335 = vmatprep.subr.mxu0 0.0
    %336 = vmatpush1.msra.mxu0 %v304
    %337 = vmatprep.subr.mxu0 0.0
    %338 = vmatpush1.msra.mxu0 %v305
    %339 = vmatprep.subr.mxu0 0.0
    %340 = vmatpush1.msra.mxu0 %v306
    %341 = vmatprep.subr.mxu0 0.0
    %342 = vmatpush1.msra.mxu0 %v307
    %343 = vmatprep.subr.mxu0 0.0
    %344 = vmatpush1.msra.mxu0 %v308
    %345 = vmatprep.subr.mxu0 0.0
    %346 = vmatpush1.msra.mxu0 %v309
    %347 = vmatprep.subr.mxu0 0.0
    %348 = vmatpush1.msra.mxu0 %v310
    %349 = vmatprep.subr.mxu0 0.0
    %350 = vmatpush1.msra.mxu0 %v311
    %351 = vmatprep.subr.mxu0 0.0
    %352 = vmatpush1.msra.mxu0 0.0
    %353 = vmatprep.subr.mxu0 0.0
    %354 = vmatpush1.msra.mxu0 0.0
    %355 = vmatprep.subr.mxu0 0.0
    %356 = vmatpush1.msra.mxu0 0.0
    %357 = vmatprep.subr.mxu0 0.0
    %358 = vmatpush1.msra.mxu0 0.0
    %359 = vmatprep.subr.mxu0 0.0
    %360 = vmatpush1.msra.mxu0 0.0
    %361 = vmatprep.subr.mxu0 0.0
    %362 = vmatpush1.msra.mxu0 0.0
    %363 = vmatprep.subr.mxu0 0.0
    %364 = vmatpush1.msra.mxu0 0.0
    %365 = vmatprep.subr.mxu0 0.0
    %366 = vmatpush1.msra.mxu0 0.0
    %367 = vmatprep.subr.mxu0 0.0
    %368 = vmatpush1.msra.mxu0 0.0
    %369 = vmatprep.subr.mxu0 0.0
    %370 = vmatpush1.msra.mxu0 0.0
    %371 = vmatprep.subr.mxu0 0.0
    %372 = vmatpush1.msra.mxu0 0.0
    %373 = vmatprep.subr.mxu0 0.0
    %374 = vmatpush1.msra.mxu0 0.0
    %375 = vmatprep.subr.mxu0 0.0
    %376 = vmatpush1.msra.mxu0 0.0
    %377 = vmatprep.subr.mxu0 0.0
    %378 = vmatpush1.msra.mxu0 0.0
    %379 = vmatprep.subr.mxu0 0.0
    %380 = vmatpush1.msra.mxu0 0.0
    %381 = vmatprep.subr.mxu0 0.0
    %382 = vmatpush1.msra.mxu0 0.0
    %383 = vmatprep.mubr.f32.mxu0 0.0
    %384 = vmatmul.mubr.f32.gmra.mrb[0].mxu0 %v294
    %v385 = vpop.f32.mrb[0].mxu0
    %v386 = vadd.f32 %v317, %v385
    %v387 = vpop.f32.mrb[0].mxu0
    %388 = vdwg.mxu0
    %v389 = vmax.f32 %v386, 0.0
    %390 = vst [vmem:[#allocation15] sm:$0xff] %v389
    %v391 = vld [vmem:[#allocation10] sm:$0xff]
    %v392 = vld [vmem:[#allocation10 + $0x8] sm:$0xff]
    %v393 = vld [vmem:[#allocation10 + $0x10] sm:$0xff]
    %v394 = vld [vmem:[#allocation10 + $0x18] sm:$0xff]
    %v395 = vld [vmem:[#allocation10 + $0x20] sm:$0xff]
    %v396 = vld [vmem:[#allocation10 + $0x28] sm:$0xff]
    %v397 = vld [vmem:[#allocation10 + $0x30] sm:$0xff]
    %v398 = vld [vmem:[#allocation10 + $0x38] sm:$0xff]
    %v399 = vld [vmem:[#allocation10 + $0x40] sm:$0xff]
    %v400 = vld [vmem:[#allocation10 + $0x48] sm:$0xff]
    %v401 = vld [vmem:[#allocation10 + $0x50] sm:$0xff]
    %v402 = vld [vmem:[#allocation10 + $0x58] sm:$0xff]
    %v403 = vld [vmem:[#allocation10 + $0x60] sm:$0xff]
    %v404 = vld [vmem:[#allocation10 + $0x68] sm:$0xff]
    %v405 = vld [vmem:[#allocation10 + $0x70] sm:$0xff]
    %v406 = vld [vmem:[#allocation10 + $0x78] sm:$0xff]
    %v407 = vld [vmem:[%s8] sm:$0x1]
    %v409 = vlaneseq
    %v410 = vshrl.u32 %v409, 7
    %v411 = vsub.s32 0, %v410
    %v412 = vrot.slane %v407, %v411
    %414 = vmatprep.subr.mxu0 0.0
    %415 = vmatpush1.msra.mxu0 %v391
    %416 = vmatprep.subr.mxu0 0.0
    %417 = vmatpush1.msra.mxu0 %v392
    %418 = vmatprep.subr.mxu0 0.0
    %419 = vmatpush1.msra.mxu0 %v393
    %420 = vmatprep.subr.mxu0 0.0
    %421 = vmatpush1.msra.mxu0 %v394
    %422 = vmatprep.subr.mxu0 0.0
    %423 = vmatpush1.msra.mxu0 %v395
    %424 = vmatprep.subr.mxu0 0.0
    %425 = vmatpush1.msra.mxu0 %v396
    %426 = vmatprep.subr.mxu0 0.0
    %427 = vmatpush1.msra.mxu0 %v397
    %428 = vmatprep.subr.mxu0 0.0
    %429 = vmatpush1.msra.mxu0 %v398
    %430 = vmatprep.subr.mxu0 0.0
    %431 = vmatpush1.msra.mxu0 %v399
    %432 = vmatprep.subr.mxu0 0.0
    %433 = vmatpush1.msra.mxu0 %v400
    %434 = vmatprep.subr.mxu0 0.0
    %435 = vmatpush1.msra.mxu0 %v401
    %436 = vmatprep.subr.mxu0 0.0
    %437 = vmatpush1.msra.mxu0 %v402
    %438 = vmatprep.subr.mxu0 0.0
    %439 = vmatpush1.msra.mxu0 %v403
    %440 = vmatprep.subr.mxu0 0.0
    %441 = vmatpush1.msra.mxu0 %v404
    %442 = vmatprep.subr.mxu0 0.0
    %443 = vmatpush1.msra.mxu0 %v405
    %444 = vmatprep.subr.mxu0 0.0
    %445 = vmatpush1.msra.mxu0 %v406
    %446 = vmatprep.subr.mxu0 0.0
    %447 = vmatpush1.msra.mxu0 0.0
    %448 = vmatprep.subr.mxu0 0.0
    %449 = vmatpush1.msra.mxu0 0.0
    %450 = vmatprep.subr.mxu0 0.0
    %451 = vmatpush1.msra.mxu0 0.0
    %452 = vmatprep.subr.mxu0 0.0
    %453 = vmatpush1.msra.mxu0 0.0
    %454 = vmatprep.subr.mxu0 0.0
    %455 = vmatpush1.msra.mxu0 0.0
    %456 = vmatprep.subr.mxu0 0.0
    %457 = vmatpush1.msra.mxu0 0.0
    %458 = vmatprep.subr.mxu0 0.0
    %459 = vmatpush1.msra.mxu0 0.0
    %460 = vmatprep.subr.mxu0 0.0
    %461 = vmatpush1.msra.mxu0 0.0
    %462 = vmatprep.subr.mxu0 0.0
    %463 = vmatpush1.msra.mxu0 0.0
    %464 = vmatprep.subr.mxu0 0.0
    %465 = vmatpush1.msra.mxu0 0.0
    %466 = vmatprep.subr.mxu0 0.0
    %467 = vmatpush1.msra.mxu0 0.0
    %468 = vmatprep.subr.mxu0 0.0
    %469 = vmatpush1.msra.mxu0 0.0
    %470 = vmatprep.subr.mxu0 0.0
    %471 = vmatpush1.msra.mxu0 0.0
    %472 = vmatprep.subr.mxu0 0.0
    %473 = vmatpush1.msra.mxu0 0.0
    %474 = vmatprep.subr.mxu0 0.0
    %475 = vmatpush1.msra.mxu0 0.0
    %476 = vmatprep.subr.mxu0 0.0
    %477 = vmatpush1.msra.mxu0 0.0
    %478 = vmatprep.mubr.f32.mxu0 0.0
    %479 = vmatmul.mubr.f32.gmra.mrb[0].mxu0 %v389
    %v480 = vpop.f32.mrb[0].mxu0
    %v481 = vadd.f32 %v412, %v480
    %v482 = vpop.f32.mrb[0].mxu0
    %483 = vdwg.mxu0
    %484 = vst [vmem:[#allocation11] sm:$0xff] %v481
    // Predicated region
    $region58: #{tpu_custom_call.1} parent=1 // pred_check
      _
    $region59: #{tpu_custom_call.1} parent=1 // pred_check_branch
      %486 = sbr.rel (0) target = $region61
    $region60: #{tpu_custom_call.1} parent=1 // pred_region
      %s488 = ssub.s32 128, 128
      %489 = vsyncadd [#allocation4], %s488
      %s491 = sshll.u32 [#allocation11], 4
      %s492 = int_to_ptr.vmem [resolvable:$true] %s491
      %494 = dma.vmem_to_hbm [thread:$0]  %s492, 128, %s9, [#allocation4]
    $region61: #{tpu_custom_call.1} parent=1 // pred_fallthru
      _
    // Predicated region
    $region62: #{tpu_custom_call.1} parent=1 // pred_check
      _
    $region63: #{tpu_custom_call.1} parent=1 // pred_check_branch
      %496 = sbr.rel (0) target = $region65
    $region64: #{tpu_custom_call.1} parent=1 // pred_region
      %s498 = ssub.s32 128, 128
      %499 = vsyncadd [#allocation13], %s498
      %s501 = sshll.u32 [#allocation12], 4
      %s502 = int_to_ptr.vmem [resolvable:$true] %s501
      %504 = dma.vmem_to_hbm [thread:$0]  %s502, 128, %s10, [#allocation13]
    $region65: #{tpu_custom_call.1} parent=1 // pred_fallthru
      _
    // Predicated region
    $region66: #{tpu_custom_call.1} parent=1 // pred_check
      _
    $region67: #{tpu_custom_call.1} parent=1 // pred_check_branch
      %506 = sbr.rel (0) target = $region69
    $region68: #{tpu_custom_call.1} parent=1 // pred_region
      %s508 = ssub.s32 128, 128
      %509 = vsyncadd [#allocation13], %s508
      %s511 = sshll.u32 [#allocation14], 4
      %s512 = int_to_ptr.vmem [resolvable:$true] %s511
      %514 = dma.vmem_to_hbm [thread:$0]  %s512, 128, %s11, [#allocation13]
    $region69: #{tpu_custom_call.1} parent=1 // pred_fallthru
      _
    // Predicated region
    $region70: #{tpu_custom_call.1} parent=1 // pred_check
      _
    $region71: #{tpu_custom_call.1} parent=1 // pred_check_branch
      %516 = sbr.rel (0) target = $region73
    $region72: #{tpu_custom_call.1} parent=1 // pred_region
      %s518 = ssub.s32 128, 128
      %519 = vsyncadd [#allocation16], %s518
      %s521 = sshll.u32 [#allocation15], 4
      %s522 = int_to_ptr.vmem [resolvable:$true] %s521
      %524 = dma.vmem_to_hbm [thread:$0]  %s522, 128, %s12, [#allocation16]
    $region73: #{tpu_custom_call.1} parent=1 // pred_fallthru
      _
    // Predicated region
    $region74: #{tpu_custom_call.1} parent=1 // pred_check
      _
    $region75: #{tpu_custom_call.1} parent=1 // pred_check_branch
      %526 = sbr.rel (0) target = $region77
    $region76: #{tpu_custom_call.1} parent=1 // pred_region
      %527 = dma.done [#allocation4], 128
    $region77: #{tpu_custom_call.1} parent=1 // pred_fallthru
      _
    // Predicated region
    $region78: #{tpu_custom_call.1} parent=1 // pred_check
      _
    $region79: #{tpu_custom_call.1} parent=1 // pred_check_branch
      %529 = sbr.rel (0) target = $region81
    $region80: #{tpu_custom_call.1} parent=1 // pred_region
      %530 = dma.done [#allocation13], 128
    $region81: #{tpu_custom_call.1} parent=1 // pred_fallthru
      _
    // Predicated region
    $region82: #{tpu_custom_call.1} parent=1 // pred_check
      _
    $region83: #{tpu_custom_call.1} parent=1 // pred_check_branch
      %532 = sbr.rel (0) target = $region85
    $region84: #{tpu_custom_call.1} parent=1 // pred_region
      %533 = dma.done [#allocation13], 128
    $region85: #{tpu_custom_call.1} parent=1 // pred_fallthru
      _
    // Predicated region
    $region86: #{tpu_custom_call.1} parent=1 // pred_check
      _
    $region87: #{tpu_custom_call.1} parent=1 // pred_check_branch
      %535 = sbr.rel (0) target = $region89
    $region88: #{tpu_custom_call.1} parent=1 // pred_region
      %536 = dma.done [#allocation16], 128
    $region89: #{tpu_custom_call.1} parent=1 // pred_fallthru
      _
    %537 = vsyncpa [#allocation3], 1
    %538 = vsyncpa [#allocation6], 1
    %539 = vsyncpa [#allocation9], 1
    %540 = vsyncpa [#allocation4], 1
    %541 = vsyncpa [#allocation13], 1
    %542 = vsyncpa [#allocation16], 1

</llo_original>
